<compile_context>
chip_gen: v6e
topology: v6e:2x2x1
jax: 0.10.0
libtpu: 0.0.40
codegen_flags: <defaults>
</compile_context>

<pallas_src>
import functools

import jax
import jax.numpy as jnp
import numpy as np
from jax.experimental import pallas as pl
from jax.experimental.pallas import tpu as pltpu

BACKGROUND = 0  # label_map['background']


def cxcy_to_xy(cxcy):
    return jnp.concatenate(
        [cxcy[..., :2] - cxcy[..., 2:] / 2.0, cxcy[..., :2] + cxcy[..., 2:] / 2.0],
        axis=-1,
    )


def _multibox_kernel(
    gt_ref,     # (Bt, M, 8)     f32  [x1, y1, x2, y2, label, valid, area_b, 0]
    gtt_ref,    # (Bt, 8, M)     f32  transpose of the above (for the MXU gather)
    dbp_ref,    # (16, n_db)     f32  default-box params (see wrapper), n_db padded
    locs_ref,   # (Bt, 4, n_db)  f32  predicted loc offsets
    cls_ref,    # (Bt, C, n_db)  f32  predicted class logits
    stats_ref,  # (1, 8, 128)    f32  out: row0 = [n_pos, loc_l1_pos, ce_pos, ce_hard, 0..]
    *,
    threshold,
    neg_pos,
    n_db_valid,
):
    bt, M, _ = gt_ref.shape
    n_db = dbp_ref.shape[1]
    C = cls_ref.shape[1]
    f32 = jnp.float32

    # ---- default-box quantities: hoisted once per grid step (shared by Bt imgs)
    dx1 = dbp_ref[0:1, :]
    dy1 = dbp_ref[1:2, :]
    dx2 = dbp_ref[2:3, :]
    dy2 = dbp_ref[3:4, :]
    pcx = dbp_ref[4:5, :]
    pcy = dbp_ref[5:6, :]
    inv_pw10 = dbp_ref[6:7, :]
    inv_ph10 = dbp_ref[7:8, :]
    log_pw = dbp_ref[8:9, :]
    log_ph = dbp_ref[9:10, :]
    area_d = dbp_ref[10:11, :]

    obj_iota = jax.lax.broadcasted_iota(jnp.int32, (M, n_db), 0)
    db_iota = jax.lax.broadcasted_iota(jnp.int32, (M, n_db), 1)
    cls_iota = jax.lax.broadcasted_iota(jnp.int32, (C, n_db), 0)
    lane_iota = jax.lax.broadcasted_iota(jnp.int32, (1, n_db), 1)
    lane_valid = lane_iota < n_db_valid          # mask for the 128-padded tail lanes
    lane128 = jax.lax.broadcasted_iota(jnp.int32, (1, 128), 1)

    def sl1(d):
        ad = jnp.abs(d)
        return jnp.where(ad < 1.0, 0.5 * d * d, ad - 0.5)

    def per_image(b, acc_row):
        gt = gt_ref[b]                          # (M, 8)
        bx1 = gt[:, 0:1]
        by1 = gt[:, 1:2]
        bx2 = gt[:, 2:3]
        by2 = gt[:, 3:4]
        valid = gt[:, 5:6] > 0.5
        area_b = gt[:, 6:7]

        # --- IoU between gt boxes (sublanes) and default boxes (lanes) --------
        iw = jnp.maximum(jnp.minimum(bx2, dx2) - jnp.maximum(bx1, dx1), 0.0)
        ih = jnp.maximum(jnp.minimum(by2, dy2) - jnp.maximum(by1, dy1), 0.0)
        inter = iw * ih
        iou = inter / jnp.maximum(area_b + area_d - inter, 1e-10)
        iou_m = jnp.where(valid, iou, -1.0)                        # (M, n_db)

        # --- bipartite matching with forced matches (first-max tie-break) -----
        ov_max = jnp.max(iou_m, axis=0, keepdims=True)             # (1, n_db)
        obj_for_db = jnp.min(
            jnp.where(iou_m >= ov_max, obj_iota, M), axis=0, keepdims=True)
        ov_max_obj = jnp.max(iou_m, axis=1, keepdims=True)         # (M, 1)
        db_for_obj = jnp.min(
            jnp.where(iou_m >= ov_max_obj, db_iota, n_db), axis=1, keepdims=True)
        forced = jnp.logical_and(valid, db_for_obj == db_iota)
        forced_obj = jnp.max(jnp.where(forced, obj_iota, -1), axis=0, keepdims=True)
        has_forced = forced_obj >= 0
        final_obj = jnp.where(has_forced, forced_obj, obj_for_db)  # (1, n_db)
        final_ov = jnp.where(has_forced, 1.0, ov_max)              # (1, n_db)

        onehot = jnp.where(obj_iota == final_obj, 1.0, 0.0)        # (M, n_db) f32

        # --- matched gt coords + label: ONE default-precision MXU matmul ------
        # bf16 hi/mid/lo split of the gt matrix keeps the gather f32-accurate
        # (error <= 2^-25 rel); labels (< 256) gather bit-exactly via the hi row.
        gtt = gtt_ref[b]                                           # (8, M)
        hi = gtt.astype(jnp.bfloat16).astype(f32)
        mid = (gtt - hi).astype(jnp.bfloat16).astype(f32)
        lo = gtt - hi - mid
        split = jnp.concatenate([hi, mid, lo], axis=0)             # (24, M)
        g3 = jax.lax.dot(split, onehot,
                         precision=jax.lax.Precision.DEFAULT,
                         preferred_element_type=f32)               # (24, n_db)
        gathered = g3[0:8, :] + g3[8:16, :] + g3[16:24, :]         # (8, n_db)
        gx1 = gathered[0:1, :]
        gy1 = gathered[1:2, :]
        gx2 = gathered[2:3, :]
        gy2 = gathered[3:4, :]
        label_db = gathered[4:5, :]

        is_bg = final_ov < threshold
        gt_cls = jnp.where(is_bg, float(BACKGROUND), label_db)
        gt_cls_i = (gt_cls + 0.5).astype(jnp.int32)                # (1, n_db)
        pos = jnp.logical_and(gt_cls_i != BACKGROUND, lane_valid)

        # --- encode matched boxes w.r.t. default boxes (hoisted db math) ------
        gcx = (gx1 + gx2) * 0.5
        gcy = (gy1 + gy2) * 0.5
        gw = jnp.maximum(gx2 - gx1, 1e-8)   # clamp keeps log finite for bg boxes
        gh = jnp.maximum(gy2 - gy1, 1e-8)
        t_cx = (gcx - pcx) * inv_pw10
        t_cy = (gcy - pcy) * inv_ph10
        t_w = (jnp.log(gw) - log_pw) * 5.0
        t_h = (jnp.log(gh) - log_ph) * 5.0

        locs = locs_ref[b]                                         # (4, n_db)
        locl1 = (sl1(locs[0:1, :] - t_cx) + sl1(locs[1:2, :] - t_cy)
                 + sl1(locs[2:3, :] - t_w) + sl1(locs[3:4, :] - t_h))

        # --- per-default-box cross-entropy -------------------------------------
        # TODO(synk): MXU offload of the C-axis reductions / bf16 exp skipped
        # to stay numerically faithful to the f32 PyTorch reference.
        logits = cls_ref[b]                                        # (C, n_db)
        mx = jnp.max(logits, axis=0, keepdims=True)
        lse = jnp.log(jnp.sum(jnp.exp(logits - mx), axis=0, keepdims=True)) + mx
        logit_gt = jnp.sum(
            jnp.where(cls_iota == gt_cls_i, logits, 0.0), axis=0, keepdims=True)
        ce = lse - logit_gt                                        # (1, n_db)

        # --- per-image positive reductions -------------------------------------
        n_pos_11 = jnp.sum(jnp.where(pos, 1.0, 0.0), axis=1, keepdims=True)
        loc_sum_11 = jnp.sum(jnp.where(pos, locl1, 0.0), axis=1, keepdims=True)
        ce_pos_11 = jnp.sum(jnp.where(pos, ce, 0.0), axis=1, keepdims=True)

        # --- exact in-kernel hard-negative mining -------------------------------
        # top-(neg_pos * n_pos) sum of the negative CE row via a bit-level binary
        # search (ce >= 0, so the int32 bit pattern is order-preserving).
        neg_mask = jnp.logical_and(jnp.logical_not(pos), lane_valid)
        ce_neg = jnp.maximum(jnp.where(neg_mask, ce, 0.0), 0.0)    # (1, n_db)
        k_hard = neg_pos * n_pos_11                                # (1, 1)

        ce_bits = pltpu.bitcast(ce_neg, jnp.int32)                 # (1, n_db)
        max_ce = jnp.max(ce_neg, axis=1, keepdims=True)            # (1, 1)
        hi0 = pltpu.bitcast(max_ce, jnp.int32) + 1
        lo0 = jnp.zeros((1, 1), jnp.int32)

        def bs_body(_, carry):
            blo, bhi = carry
            bmid = blo + jax.lax.shift_right_logical(bhi - blo, 1)
            cnt = jnp.sum(jnp.where(ce_bits >= bmid, 1.0, 0.0),
                          axis=1, keepdims=True)
            take = cnt >= k_hard
            return jnp.where(take, bmid, blo), jnp.where(take, bhi, bmid)

        blo, _ = jax.lax.fori_loop(0, 32, bs_body, (lo0, hi0))
        vstar = pltpu.bitcast(blo, f32)                            # k-th largest value
        gt_mask = ce_neg > vstar
        cnt_gt = jnp.sum(jnp.where(gt_mask, 1.0, 0.0), axis=1, keepdims=True)
        sum_gt = jnp.sum(jnp.where(gt_mask, ce_neg, 0.0), axis=1, keepdims=True)
        hard_sum_11 = sum_gt + jnp.maximum(k_hard - cnt_gt, 0.0) * vstar
        hard_sum_11 = jnp.where(k_hard > 0.5, hard_sum_11, 0.0)

        contrib = (jnp.where(lane128 == 0, n_pos_11, 0.0)
                   + jnp.where(lane128 == 1, loc_sum_11, 0.0)
                   + jnp.where(lane128 == 2, ce_pos_11, 0.0)
                   + jnp.where(lane128 == 3, hard_sum_11, 0.0))
        return acc_row + contrib

    acc = jax.lax.fori_loop(0, bt, per_image, jnp.zeros((1, 128), f32))

    # single store of the fully-reduced per-step stats block
    sub8 = jax.lax.broadcasted_iota(jnp.int32, (8, 128), 0)
    stats_ref[0] = jnp.where(sub8 == 0, acc, 0.0)


@functools.partial(jax.jit, static_argnames=("threshold", "neg_pos", "alpha"))
def multibox_loss(locs_pred, cls_pred, boxes_xy, labels, valid, db_cxcy,
                  *, threshold=0.5, neg_pos=3, alpha=1.0):
    B, n_db, _ = locs_pred.shape
    C = cls_pred.shape[2]
    M = boxes_xy.shape[1]
    f32 = jnp.float32

    locs_pred = locs_pred.astype(f32)
    cls_pred = cls_pred.astype(f32)
    boxes_xy = boxes_xy.astype(f32)
    db_cxcy = db_cxcy.astype(f32)

    # ---- default-box params, computed once: (16, n_db) ------------------------
    db_xy = cxcy_to_xy(db_cxcy)
    pcx, pcy, pw, ph = (db_cxcy[:, k] for k in range(4))
    dx1, dy1, dx2, dy2 = (db_xy[:, k] for k in range(4))
    zeros_db = jnp.zeros((n_db,), f32)
    db_params = jnp.stack(
        [dx1, dy1, dx2, dy2, pcx, pcy, 10.0 / pw, 10.0 / ph,
         jnp.log(pw), jnp.log(ph), (dx2 - dx1) * (dy2 - dy1),
         zeros_db, zeros_db, zeros_db, zeros_db, zeros_db], axis=0)    # (16, n_db)

    # ---- packed ground truth: [x1, y1, x2, y2, label, valid, area_b, 0] -------
    area_b = (boxes_xy[..., 2] - boxes_xy[..., 0]) * (boxes_xy[..., 3] - boxes_xy[..., 1])
    gt_pack = jnp.stack(
        [boxes_xy[..., 0], boxes_xy[..., 1], boxes_xy[..., 2], boxes_xy[..., 3],
         labels.astype(f32), valid.astype(f32), area_b, jnp.zeros((B, M), f32)],
        axis=-1)                                                       # (B, M, 8)
    gt_pack_t = jnp.transpose(gt_pack, (0, 2, 1))                      # (B, 8, M)

    # ---- layout: n_db on the lane axis inside the kernel -----------------------
    locs_t = jnp.transpose(locs_pred, (0, 2, 1))                       # (B, 4, n_db)
    # TODO(synk): produce cls_pred in (B, C, n_db) layout upstream; this transpose
    # is a full HBM round trip at real SSD sizes.
    cls_t = jnp.transpose(cls_pred, (0, 2, 1))                         # (B, C, n_db)

    # ---- pad n_db to a lane-dense multiple of 128 -------------------------------
    n_db_pad = ((n_db + 127) // 128) * 128
    if n_db_pad != n_db:
        p = n_db_pad - n_db
        db_params = jnp.pad(db_params, ((0, 0), (0, p)))
        locs_t = jnp.pad(locs_t, ((0, 0), (0, 0), (0, p)))
        cls_t = jnp.pad(cls_t, ((0, 0), (0, 0), (0, p)))

    # ---- batch tiling: keep >=2 grid steps (v7x megacore), cap bt at 8 (VMEM) ---
    if B >= 16:
        bt = 8
    else:
        bt = max(1, B // 2)
    b_pad = ((B + bt - 1) // bt) * bt
    if b_pad != B:            # pad with dummy images (valid = 0 -> zero contribution)
        pad = b_pad - B
        padb = lambda x: jnp.concatenate(
            [x, jnp.zeros((pad,) + x.shape[1:], x.dtype)], axis=0)
        gt_pack, gt_pack_t, locs_t, cls_t = map(
            padb, (gt_pack, gt_pack_t, locs_t, cls_t))
    n_steps = b_pad // bt

    kern = functools.partial(
        _multibox_kernel,
        threshold=float(threshold),
        neg_pos=float(neg_pos),
        n_db_valid=int(n_db),
    )
    stats = pl.pallas_call(
        kern,
        grid=(n_steps,),
        in_specs=[
            pl.BlockSpec((bt, M, 8), lambda i: (i, 0, 0)),
            pl.BlockSpec((bt, 8, M), lambda i: (i, 0, 0)),
            pl.BlockSpec((16, n_db_pad), lambda i: (0, 0)),
            pl.BlockSpec((bt, 4, n_db_pad), lambda i: (i, 0, 0)),
            pl.BlockSpec((bt, C, n_db_pad), lambda i: (i, 0, 0)),
        ],
        out_specs=pl.BlockSpec((1, 8, 128), lambda i: (i, 0, 0)),
        out_shape=jax.ShapeDtypeStruct((n_steps, 8, 128), f32),
        compiler_params=pltpu.CompilerParams(
            dimension_semantics=("parallel",),
            vmem_limit_bytes=40 * 1024 * 1024,   # leaves headroom inside v7x 64 MiB
        ),
    )(gt_pack, gt_pack_t, db_params, locs_t, cls_t)

    tot = jnp.sum(stats, axis=(0, 1))            # (128,): [n_pos, loc_sum, ce_pos, ce_hard, ...]
    num_pos = tot[0]
    num_pos_safe = jnp.maximum(num_pos, 1.0)     # guard: no positives in batch

    # SmoothL1Loss(reduction='mean') over the (N_pos, 4) selected elements
    loc_loss = tot[1] / (4.0 * num_pos_safe)
    conf_loss = (tot[3] + tot[2]) / num_pos_safe
    return alpha * loc_loss + conf_loss


def _ref_multibox_loss(locs_pred, cls_pred, boxes_xy, labels, valid, db_cxcy,
                       threshold, neg_pos, alpha):
    """Pure-JAX reference with identical matching / tie-breaking semantics."""
    B, n_db, _ = locs_pred.shape
    M = boxes_xy.shape[1]
    db_xy = cxcy_to_xy(db_cxcy)
    gt_cls_list, gt_locs_list = [], []
    for i in range(B):
        b, lab, v = boxes_xy[i], labels[i], valid[i] > 0.5
        bx1, by1, bx2, by2 = (b[:, k:k + 1] for k in range(4))
        dx1, dy1, dx2, dy2 = (db_xy[:, k][None, :] for k in range(4))
        iw = jnp.maximum(jnp.minimum(bx2, dx2) - jnp.maximum(bx1, dx1), 0.0)
        ih = jnp.maximum(jnp.minimum(by2, dy2) - jnp.maximum(by1, dy1), 0.0)
        inter = iw * ih
        union = (bx2 - bx1) * (by2 - by1) + (dx2 - dx1) * (dy2 - dy1) - inter
        iou = jnp.where(v[:, None], inter / union, -1.0)
        obj_iota = jnp.broadcast_to(jnp.arange(M)[:, None], (M, n_db))
        db_iota = jnp.broadcast_to(jnp.arange(n_db)[None, :], (M, n_db))
        ov_max = jnp.max(iou, axis=0, keepdims=True)
        obj_for_db = jnp.min(jnp.where(iou >= ov_max, obj_iota, M), axis=0, keepdims=True)
        ov_max_obj = jnp.max(iou, axis=1, keepdims=True)
        db_for_obj = jnp.min(jnp.where(iou >= ov_max_obj, db_iota, n_db), axis=1, keepdims=True)
        forced = jnp.logical_and(v[:, None], db_for_obj == db_iota)
        forced_obj = jnp.max(jnp.where(forced, obj_iota, -1), axis=0, keepdims=True)
        has_forced = forced_obj >= 0
        final_obj = jnp.where(has_forced, forced_obj, obj_for_db)
        final_ov = jnp.where(has_forced, 1.0, ov_max)
        onehot = obj_iota == final_obj
        label_db = jnp.sum(jnp.where(onehot, lab[:, None], 0), axis=0, keepdims=True)
        gt_cls = jnp.where(final_ov < threshold, BACKGROUND, label_db)[0]
        gx1 = jnp.sum(jnp.where(onehot, bx1, 0.0), axis=0)
        gy1 = jnp.sum(jnp.where(onehot, by1, 0.0), axis=0)
        gx2 = jnp.sum(jnp.where(onehot, bx2, 0.0), axis=0)
        gy2 = jnp.sum(jnp.where(onehot, by2, 0.0), axis=0)
        gcx, gcy = (gx1 + gx2) / 2.0, (gy1 + gy2) / 2.0
        gw, gh = gx2 - gx1, gy2 - gy1
        pcx, pcy, pw, ph = (db_cxcy[:, k] for k in range(4))
        gt_locs = jnp.stack(
            [(gcx - pcx) / (pw / 10.0), (gcy - pcy) / (ph / 10.0),
             jnp.log(gw / pw) * 5.0, jnp.log(gh / ph) * 5.0], axis=-1)
        gt_cls_list.append(gt_cls)
        gt_locs_list.append(gt_locs)
    gt_cls = jnp.stack(gt_cls_list)
    gt_locs = jnp.stack(gt_locs_list)

    pos = gt_cls != BACKGROUND
    n_pos = jnp.sum(pos.astype(jnp.int32), axis=1)
    num_pos = jnp.sum(n_pos).astype(jnp.float32)
    d = locs_pred - gt_locs
    ad = jnp.abs(d)
    sl1 = jnp.where(ad < 1.0, 0.5 * d * d, ad - 0.5)
    loc_loss = jnp.sum(jnp.where(pos[..., None], sl1, 0.0)) / (4.0 * num_pos)
    logz = jax.scipy.special.logsumexp(cls_pred, axis=2)
    gt_logit = jnp.take_along_axis(cls_pred, gt_cls[..., None], axis=2)[..., 0]
    ce = logz - gt_logit
    conf_pos_sum = jnp.sum(jnp.where(pos, ce, 0.0))
    conf_neg = jnp.where(pos, 0.0, ce)
    conf_neg_sorted = -jnp.sort(-conf_neg, axis=1)
    hard = jnp.arange(n_db)[None, :] < (neg_pos * n_pos)[:, None]
    conf_hard_sum = jnp.sum(jnp.where(hard, conf_neg_sorted, 0.0))
    return alpha * loc_loss + (conf_hard_sum + conf_pos_sum) / num_pos


if __name__ == "__main__":
    key = jax.random.PRNGKey(0)
    B, M, C = 4, 8, 36          # batch, max objects per image (padded), num classes
    threshold, neg_pos, alpha = 0.5, 3, 1.0

    # deterministic default boxes: 15x15 grid of centers, fixed size (cxcy, [0,1]).
    # n_db = 225 is NOT a multiple of 128, so the lane-padding/masking path is tested.
    g = 15
    n_db = g * g
    cs = (jnp.arange(g, dtype=jnp.float32) + 0.5) / g
    cx, cy = jnp.meshgrid(cs, cs, indexing="ij")
    wh = jnp.full((n_db,), 0.12, dtype=jnp.float32)
    db_cxcy = jnp.stack([cx.reshape(-1), cy.reshape(-1), wh, wh], axis=-1)  # (n_db, 4)

    k1, k2, k3, k4, k5 = jax.random.split(key, 5)
    locs_pred = jax.random.normal(k1, (B, n_db, 4), dtype=jnp.float32)
    cls_pred = jax.random.normal(k2, (B, n_db, C), dtype=jnp.float32)

    # padded ground-truth boxes (xy), labels and validity mask
    xy1 = jax.random.uniform(k3, (B, M, 2), minval=0.05, maxval=0.6)
    wh_gt = jax.random.uniform(k4, (B, M, 2), minval=0.08, maxval=0.3)
    boxes_xy = jnp.concatenate([xy1, xy1 + wh_gt], axis=-1).astype(jnp.float32)
    labels = jax.random.randint(k5, (B, M), 1, C).astype(jnp.int32)
    n_objects = jnp.array([3, 5, 2, 4], dtype=jnp.int32)
    valid = (jnp.arange(M)[None, :] < n_objects[:, None]).astype(jnp.float32)

    loss = multibox_loss(locs_pred, cls_pred, boxes_xy, labels, valid, db_cxcy,
                         threshold=threshold, neg_pos=neg_pos, alpha=alpha)
    loss = jax.block_until_ready(loss)

    ref = _ref_multibox_loss(locs_pred, cls_pred, boxes_xy, labels, valid, db_cxcy,
                             threshold, neg_pos, alpha)

    assert np.isfinite(float(loss)), float(loss)
    assert abs(float(loss) - float(ref)) < 1e-3 * max(1.0, abs(float(ref))), (float(loss), float(ref))
    print("KERNEL_OK")
</pallas_src>

<mosaic_0001>
module attributes {stable_mosaic.version = 11 : i64} {
  func.func @_multibox_kernel(%arg0: i32, %arg1: memref<2x8x8xf32, #tpu.memory_space<vmem>>, %arg2: memref<2x8x8xf32, #tpu.memory_space<vmem>>, %arg3: memref<16x256xf32, #tpu.memory_space<vmem>>, %arg4: memref<2x4x256xf32, #tpu.memory_space<vmem>>, %arg5: memref<2x36x256xf32, #tpu.memory_space<vmem>>, %arg6: memref<1x8x128xf32, #tpu.memory_space<vmem>>) attributes {dimension_semantics = [#tpu.dimension_semantics<parallel>], iteration_bounds = array<i64: 2>, scalar_prefetch = 0 : i64, scratch_operands = 0 : i64, tpu.core_type = #tpu.core_type<tc>, window_params = [{transform_indices = @transform_0, window_bounds = array<i64: 2, 8, 8>}, {transform_indices = @transform_1, window_bounds = array<i64: 2, 8, 8>}, {pipeline_mode = #tpu.pipeline_mode<synchronous>, transform_indices = @transform_2, window_bounds = array<i64: 16, 256>}, {transform_indices = @transform_3, window_bounds = array<i64: 2, 4, 256>}, {transform_indices = @transform_4, window_bounds = array<i64: 2, 36, 256>}, {transform_indices = @transform_5, window_bounds = array<i64: 1, 8, 128>}]} {
    %c0 = arith.constant 0 : index
    %c0_0 = arith.constant 0 : index
    %0 = vector.load %arg3[%c0, %c0_0] : memref<16x256xf32, #tpu.memory_space<vmem>>, vector<1x256xf32>
    %c1 = arith.constant 1 : index
    %c0_1 = arith.constant 0 : index
    %1 = vector.load %arg3[%c1, %c0_1] : memref<16x256xf32, #tpu.memory_space<vmem>>, vector<1x256xf32>
    %c2 = arith.constant 2 : index
    %c0_2 = arith.constant 0 : index
    %2 = vector.load %arg3[%c2, %c0_2] : memref<16x256xf32, #tpu.memory_space<vmem>>, vector<1x256xf32>
    %c3 = arith.constant 3 : index
    %c0_3 = arith.constant 0 : index
    %3 = vector.load %arg3[%c3, %c0_3] : memref<16x256xf32, #tpu.memory_space<vmem>>, vector<1x256xf32>
    %c4 = arith.constant 4 : index
    %c0_4 = arith.constant 0 : index
    %4 = vector.load %arg3[%c4, %c0_4] : memref<16x256xf32, #tpu.memory_space<vmem>>, vector<1x256xf32>
    %c5 = arith.constant 5 : index
    %c0_5 = arith.constant 0 : index
    %5 = vector.load %arg3[%c5, %c0_5] : memref<16x256xf32, #tpu.memory_space<vmem>>, vector<1x256xf32>
    %c6 = arith.constant 6 : index
    %c0_6 = arith.constant 0 : index
    %6 = vector.load %arg3[%c6, %c0_6] : memref<16x256xf32, #tpu.memory_space<vmem>>, vector<1x256xf32>
    %c7 = arith.constant 7 : index
    %c0_7 = arith.constant 0 : index
    %7 = vector.load %arg3[%c7, %c0_7] : memref<16x256xf32, #tpu.memory_space<vmem>>, vector<1x256xf32>
    %c8 = arith.constant 8 : index
    %c0_8 = arith.constant 0 : index
    %8 = vector.load %arg3[%c8, %c0_8] : memref<16x256xf32, #tpu.memory_space<vmem>>, vector<1x256xf32>
    %c9 = arith.constant 9 : index
    %c0_9 = arith.constant 0 : index
    %9 = vector.load %arg3[%c9, %c0_9] : memref<16x256xf32, #tpu.memory_space<vmem>>, vector<1x256xf32>
    %c10 = arith.constant 10 : index
    %c0_10 = arith.constant 0 : index
    %10 = vector.load %arg3[%c10, %c0_10] : memref<16x256xf32, #tpu.memory_space<vmem>>, vector<1x256xf32>
    %11 = tpu.iota {dimensions = array<i32: 0>} : vector<8x256xi32>
    %12 = tpu.iota {dimensions = array<i32: 1>} : vector<8x256xi32>
    %13 = tpu.iota {dimensions = array<i32: 0>} : vector<36x256xi32>
    %14 = tpu.iota {dimensions = array<i32: 1>} : vector<1x256xi32>
    %c225_i32 = arith.constant 225 : i32
    %15 = vector.broadcast %c225_i32 : i32 to vector<1x256xi32>
    %16 = arith.cmpi slt, %14, %15 : vector<1x256xi32>
    %17 = tpu.iota {dimensions = array<i32: 1>} : vector<1x128xi32>
    %cst = arith.constant 0.000000e+00 : f32
    %18 = vector.broadcast %cst : f32 to vector<1x128xf32>
    %c0_i32 = arith.constant 0 : i32
    %c2_i32 = arith.constant 2 : i32
    %19 = arith.addi %c0_i32, %c2_i32 : i32
    %c1_i32 = arith.constant 1 : i32
    %20 = scf.for %arg7 = %c0_i32 to %19 step %c1_i32 iter_args(%arg8 = %18) -> (vector<1x128xf32>)  : i32 {
      %31 = arith.index_cast %arg7 : i32 to index
      %c0_17 = arith.constant 0 : index
      %c0_18 = arith.constant 0 : index
      %32 = vector.load %arg1[%31, %c0_17, %c0_18] : memref<2x8x8xf32, #tpu.memory_space<vmem>>, vector<1x8x8xf32>
      %33 = vector.shape_cast %32 : vector<1x8x8xf32> to vector<8x8xf32>
      %34 = vector.extract_strided_slice %33 {offsets = [0, 0], sizes = [8, 1], strides = [1, 1]} : vector<8x8xf32> to vector<8x1xf32>
      %35 = vector.extract_strided_slice %33 {offsets = [0, 1], sizes = [8, 1], strides = [1, 1]} : vector<8x8xf32> to vector<8x1xf32>
      %36 = vector.extract_strided_slice %33 {offsets = [0, 2], sizes = [8, 1], strides = [1, 1]} : vector<8x8xf32> to vector<8x1xf32>
      %37 = vector.extract_strided_slice %33 {offsets = [0, 3], sizes = [8, 1], strides = [1, 1]} : vector<8x8xf32> to vector<8x1xf32>
      %38 = vector.extract_strided_slice %33 {offsets = [0, 5], sizes = [8, 1], strides = [1, 1]} : vector<8x8xf32> to vector<8x1xf32>
      %cst_19 = arith.constant 5.000000e-01 : f32
      %39 = vector.broadcast %cst_19 : f32 to vector<8x1xf32>
      %40 = arith.cmpf ogt, %38, %39 : vector<8x1xf32>
      %41 = vector.extract_strided_slice %33 {offsets = [0, 6], sizes = [8, 1], strides = [1, 1]} : vector<8x8xf32> to vector<8x1xf32>
      %42 = vector.broadcast %36 : vector<8x1xf32> to vector<8x256xf32>
      %43 = vector.broadcast %2 : vector<1x256xf32> to vector<8x256xf32>
      %44 = arith.minimumf %42, %43 : vector<8x256xf32>
      %45 = vector.broadcast %34 : vector<8x1xf32> to vector<8x256xf32>
      %46 = vector.broadcast %0 : vector<1x256xf32> to vector<8x256xf32>
      %47 = arith.maximumf %45, %46 : vector<8x256xf32>
      %48 = arith.subf %44, %47 : vector<8x256xf32>
      %cst_20 = arith.constant 0.000000e+00 : f32
      %49 = vector.broadcast %cst_20 : f32 to vector<8x256xf32>
      %50 = arith.maximumf %48, %49 : vector<8x256xf32>
      %51 = vector.broadcast %37 : vector<8x1xf32> to vector<8x256xf32>
      %52 = vector.broadcast %3 : vector<1x256xf32> to vector<8x256xf32>
      %53 = arith.minimumf %51, %52 : vector<8x256xf32>
      %54 = vector.broadcast %35 : vector<8x1xf32> to vector<8x256xf32>
      %55 = vector.broadcast %1 : vector<1x256xf32> to vector<8x256xf32>
      %56 = arith.maximumf %54, %55 : vector<8x256xf32>
      %57 = arith.subf %53, %56 : vector<8x256xf32>
      %cst_21 = arith.constant 0.000000e+00 : f32
      %58 = vector.broadcast %cst_21 : f32 to vector<8x256xf32>
      %59 = arith.maximumf %57, %58 : vector<8x256xf32>
      %60 = arith.mulf %50, %59 : vector<8x256xf32>
      %61 = vector.broadcast %41 : vector<8x1xf32> to vector<8x256xf32>
      %62 = vector.broadcast %10 : vector<1x256xf32> to vector<8x256xf32>
      %63 = arith.addf %61, %62 : vector<8x256xf32>
      %64 = arith.subf %63, %60 : vector<8x256xf32>
      %cst_22 = arith.constant 1.000000e-10 : f32
      %65 = vector.broadcast %cst_22 : f32 to vector<8x256xf32>
      %66 = arith.maximumf %64, %65 : vector<8x256xf32>
      %67 = arith.divf %60, %66 : vector<8x256xf32>
      %cst_23 = arith.constant -1.000000e+00 : f32
      %68 = vector.shape_cast %40 : vector<8x1xi1> to vector<8x1xi1>
      %69 = vector.broadcast %68 : vector<8x1xi1> to vector<8x256xi1>
      %70 = vector.broadcast %cst_23 : f32 to vector<8x256xf32>
      %71 = arith.select %69, %67, %70 : vector<8x256xi1>, vector<8x256xf32>
      %cst_24 = arith.constant dense<0xFF800000> : vector<256xf32>
      %72 = vector.multi_reduction <maximumf>, %71, %cst_24 [0] : vector<8x256xf32> to vector<256xf32>
      %73 = vector.shape_cast %72 : vector<256xf32> to vector<1x256xf32>
      %74 = vector.broadcast %73 : vector<1x256xf32> to vector<8x256xf32>
      %75 = arith.cmpf oge, %71, %74 : vector<8x256xf32>
      %c8_i32 = arith.constant 8 : i32
      %76 = vector.broadcast %c8_i32 : i32 to vector<8x256xi32>
      %77 = arith.select %75, %11, %76 : vector<8x256xi1>, vector<8x256xi32>
      %cst_25 = arith.constant dense<2147483647> : vector<256xi32>
      %78 = vector.multi_reduction <minsi>, %77, %cst_25 [0] : vector<8x256xi32> to vector<256xi32>
      %79 = vector.shape_cast %78 : vector<256xi32> to vector<1x256xi32>
      %cst_26 = arith.constant dense<0xFF800000> : vector<8xf32>
      %80 = vector.multi_reduction <maximumf>, %71, %cst_26 [1] : vector<8x256xf32> to vector<8xf32>
      %81 = vector.shape_cast %80 : vector<8xf32> to vector<8x1xf32>
      %82 = vector.broadcast %81 : vector<8x1xf32> to vector<8x256xf32>
      %83 = arith.cmpf oge, %71, %82 : vector<8x256xf32>
      %c256_i32 = arith.constant 256 : i32
      %84 = vector.broadcast %c256_i32 : i32 to vector<8x256xi32>
      %85 = arith.select %83, %12, %84 : vector<8x256xi1>, vector<8x256xi32>
      %cst_27 = arith.constant dense<2147483647> : vector<8xi32>
      %86 = vector.multi_reduction <minsi>, %85, %cst_27 [1] : vector<8x256xi32> to vector<8xi32>
      %87 = vector.shape_cast %86 : vector<8xi32> to vector<8x1xi32>
      %88 = vector.broadcast %87 : vector<8x1xi32> to vector<8x256xi32>
      %89 = arith.cmpi eq, %88, %12 : vector<8x256xi32>
      %90 = vector.broadcast %40 : vector<8x1xi1> to vector<8x256xi1>
      %91 = arith.andi %90, %89 : vector<8x256xi1>
      %c-1_i32 = arith.constant -1 : i32
      %92 = vector.broadcast %c-1_i32 : i32 to vector<8x256xi32>
      %93 = arith.select %91, %11, %92 : vector<8x256xi1>, vector<8x256xi32>
      %cst_28 = arith.constant dense<-2147483648> : vector<256xi32>
      %94 = vector.multi_reduction <maxsi>, %93, %cst_28 [0] : vector<8x256xi32> to vector<256xi32>
      %95 = vector.shape_cast %94 : vector<256xi32> to vector<1x256xi32>
      %c0_i32_29 = arith.constant 0 : i32
      %96 = vector.broadcast %c0_i32_29 : i32 to vector<1x256xi32>
      %97 = arith.cmpi sge, %95, %96 : vector<1x256xi32>
      %98 = arith.select %97, %95, %79 : vector<1x256xi1>, vector<1x256xi32>
      %cst_30 = arith.constant 1.000000e+00 : f32
      %99 = vector.broadcast %cst_30 : f32 to vector<1x256xf32>
      %100 = arith.select %97, %99, %73 : vector<1x256xi1>, vector<1x256xf32>
      %101 = vector.broadcast %98 : vector<1x256xi32> to vector<8x256xi32>
      %102 = arith.cmpi eq, %11, %101 : vector<8x256xi32>
      %cst_31 = arith.constant 1.000000e+00 : f32
      %cst_32 = arith.constant 0.000000e+00 : f32
      %103 = vector.broadcast %cst_31 : f32 to vector<8x256xf32>
      %104 = vector.broadcast %cst_32 : f32 to vector<8x256xf32>
      %105 = arith.select %102, %103, %104 : vector<8x256xi1>, vector<8x256xf32>
      %106 = arith.index_cast %arg7 : i32 to index
      %c0_33 = arith.constant 0 : index
      %c0_34 = arith.constant 0 : index
      %107 = vector.load %arg2[%106, %c0_33, %c0_34] : memref<2x8x8xf32, #tpu.memory_space<vmem>>, vector<1x8x8xf32>
      %108 = vector.shape_cast %107 : vector<1x8x8xf32> to vector<8x8xf32>
      %109 = arith.truncf %108 : vector<8x8xf32> to vector<8x8xbf16>
      %110 = arith.extf %109 : vector<8x8xbf16> to vector<8x8xf32>
      %111 = arith.subf %108, %110 : vector<8x8xf32>
      %112 = arith.truncf %111 : vector<8x8xf32> to vector<8x8xbf16>
      %113 = arith.extf %112 : vector<8x8xbf16> to vector<8x8xf32>
      %114 = arith.subf %108, %110 : vector<8x8xf32>
      %115 = arith.subf %114, %113 : vector<8x8xf32>
      %116 = tpu.concatenate %110, %113, %115 in 0 : vector<8x8xf32>, vector<8x8xf32>, vector<8x8xf32> -> vector<24x8xf32>
      %cst_35 = arith.constant dense<0.000000e+00> : vector<24x256xf32>
      %117 = tpu.matmul %116, %105, %cst_35 {dimension_numbers = #tpu.dot_dimension_numbers<[1], [0], [0], [1], [0, 0, 1, 1], [], []>} : vector<24x8xf32>, vector<8x256xf32>, vector<24x256xf32> -> vector<24x256xf32>
      %118 = vector.extract_strided_slice %117 {offsets = [0, 0], sizes = [8, 256], strides = [1, 1]} : vector<24x256xf32> to vector<8x256xf32>
      %119 = vector.extract_strided_slice %117 {offsets = [8, 0], sizes = [8, 256], strides = [1, 1]} : vector<24x256xf32> to vector<8x256xf32>
      %120 = arith.addf %118, %119 : vector<8x256xf32>
      %121 = vector.extract_strided_slice %117 {offsets = [16, 0], sizes = [8, 256], strides = [1, 1]} : vector<24x256xf32> to vector<8x256xf32>
      %122 = arith.addf %120, %121 : vector<8x256xf32>
      %123 = vector.extract_strided_slice %122 {offsets = [0, 0], sizes = [1, 256], strides = [1, 1]} : vector<8x256xf32> to vector<1x256xf32>
      %124 = vector.extract_strided_slice %122 {offsets = [1, 0], sizes = [1, 256], strides = [1, 1]} : vector<8x256xf32> to vector<1x256xf32>
      %125 = vector.extract_strided_slice %122 {offsets = [2, 0], sizes = [1, 256], strides = [1, 1]} : vector<8x256xf32> to vector<1x256xf32>
      %126 = vector.extract_strided_slice %122 {offsets = [3, 0], sizes = [1, 256], strides = [1, 1]} : vector<8x256xf32> to vector<1x256xf32>
      %127 = vector.extract_strided_slice %122 {offsets = [4, 0], sizes = [1, 256], strides = [1, 1]} : vector<8x256xf32> to vector<1x256xf32>
      %cst_36 = arith.constant 5.000000e-01 : f32
      %128 = vector.broadcast %cst_36 : f32 to vector<1x256xf32>
      %129 = arith.cmpf olt, %100, %128 : vector<1x256xf32>
      %cst_37 = arith.constant 0.000000e+00 : f32
      %130 = vector.broadcast %cst_37 : f32 to vector<1x256xf32>
      %131 = arith.select %129, %130, %127 : vector<1x256xi1>, vector<1x256xf32>
      %cst_38 = arith.constant 5.000000e-01 : f32
      %132 = vector.broadcast %cst_38 : f32 to vector<1x256xf32>
      %133 = arith.addf %131, %132 : vector<1x256xf32>
      %134 = arith.fptosi %133 : vector<1x256xf32> to vector<1x256xi32>
      %c0_i32_39 = arith.constant 0 : i32
      %135 = vector.broadcast %c0_i32_39 : i32 to vector<1x256xi32>
      %136 = arith.cmpi ne, %134, %135 : vector<1x256xi32>
      %137 = arith.andi %136, %16 : vector<1x256xi1>
      %138 = arith.addf %123, %125 : vector<1x256xf32>
      %cst_40 = arith.constant 5.000000e-01 : f32
      %139 = vector.broadcast %cst_40 : f32 to vector<1x256xf32>
      %140 = arith.mulf %138, %139 : vector<1x256xf32>
      %141 = arith.addf %124, %126 : vector<1x256xf32>
      %cst_41 = arith.constant 5.000000e-01 : f32
      %142 = vector.broadcast %cst_41 : f32 to vector<1x256xf32>
      %143 = arith.mulf %141, %142 : vector<1x256xf32>
      %144 = arith.subf %125, %123 : vector<1x256xf32>
      %cst_42 = arith.constant 9.99999993E-9 : f32
      %145 = vector.broadcast %cst_42 : f32 to vector<1x256xf32>
      %146 = arith.maximumf %144, %145 : vector<1x256xf32>
      %147 = arith.subf %126, %124 : vector<1x256xf32>
      %cst_43 = arith.constant 9.99999993E-9 : f32
      %148 = vector.broadcast %cst_43 : f32 to vector<1x256xf32>
      %149 = arith.maximumf %147, %148 : vector<1x256xf32>
      %150 = arith.subf %140, %4 : vector<1x256xf32>
      %151 = arith.mulf %150, %6 : vector<1x256xf32>
      %152 = arith.subf %143, %5 : vector<1x256xf32>
      %153 = arith.mulf %152, %7 : vector<1x256xf32>
      %154 = math.log %146 : vector<1x256xf32>
      %155 = arith.subf %154, %8 : vector<1x256xf32>
      %cst_44 = arith.constant 5.000000e+00 : f32
      %156 = vector.broadcast %cst_44 : f32 to vector<1x256xf32>
      %157 = arith.mulf %155, %156 : vector<1x256xf32>
      %158 = math.log %149 : vector<1x256xf32>
      %159 = arith.subf %158, %9 : vector<1x256xf32>
      %cst_45 = arith.constant 5.000000e+00 : f32
      %160 = vector.broadcast %cst_45 : f32 to vector<1x256xf32>
      %161 = arith.mulf %159, %160 : vector<1x256xf32>
      %162 = arith.index_cast %arg7 : i32 to index
      %c0_46 = arith.constant 0 : index
      %c0_47 = arith.constant 0 : index
      %163 = vector.load %arg4[%162, %c0_46, %c0_47] : memref<2x4x256xf32, #tpu.memory_space<vmem>>, vector<1x4x256xf32>
      %164 = vector.shape_cast %163 : vector<1x4x256xf32> to vector<4x256xf32>
      %165 = vector.extract_strided_slice %164 {offsets = [0, 0], sizes = [1, 256], strides = [1, 1]} : vector<4x256xf32> to vector<1x256xf32>
      %166 = arith.subf %165, %151 : vector<1x256xf32>
      %167 = math.absf %166 : vector<1x256xf32>
      %cst_48 = arith.constant 1.000000e+00 : f32
      %168 = vector.broadcast %cst_48 : f32 to vector<1x256xf32>
      %169 = arith.cmpf olt, %167, %168 : vector<1x256xf32>
      %cst_49 = arith.constant 5.000000e-01 : f32
      %170 = vector.broadcast %cst_49 : f32 to vector<1x256xf32>
      %171 = arith.mulf %170, %166 : vector<1x256xf32>
      %172 = arith.mulf %171, %166 : vector<1x256xf32>
      %cst_50 = arith.constant 5.000000e-01 : f32
      %173 = vector.broadcast %cst_50 : f32 to vector<1x256xf32>
      %174 = arith.subf %167, %173 : vector<1x256xf32>
      %175 = arith.select %169, %172, %174 : vector<1x256xi1>, vector<1x256xf32>
      %176 = vector.extract_strided_slice %164 {offsets = [1, 0], sizes = [1, 256], strides = [1, 1]} : vector<4x256xf32> to vector<1x256xf32>
      %177 = arith.subf %176, %153 : vector<1x256xf32>
      %178 = math.absf %177 : vector<1x256xf32>
      %cst_51 = arith.constant 1.000000e+00 : f32
      %179 = vector.broadcast %cst_51 : f32 to vector<1x256xf32>
      %180 = arith.cmpf olt, %178, %179 : vector<1x256xf32>
      %cst_52 = arith.constant 5.000000e-01 : f32
      %181 = vector.broadcast %cst_52 : f32 to vector<1x256xf32>
      %182 = arith.mulf %181, %177 : vector<1x256xf32>
      %183 = arith.mulf %182, %177 : vector<1x256xf32>
      %cst_53 = arith.constant 5.000000e-01 : f32
      %184 = vector.broadcast %cst_53 : f32 to vector<1x256xf32>
      %185 = arith.subf %178, %184 : vector<1x256xf32>
      %186 = arith.select %180, %183, %185 : vector<1x256xi1>, vector<1x256xf32>
      %187 = arith.addf %175, %186 : vector<1x256xf32>
      %188 = vector.extract_strided_slice %164 {offsets = [2, 0], sizes = [1, 256], strides = [1, 1]} : vector<4x256xf32> to vector<1x256xf32>
      %189 = arith.subf %188, %157 : vector<1x256xf32>
      %190 = math.absf %189 : vector<1x256xf32>
      %cst_54 = arith.constant 1.000000e+00 : f32
      %191 = vector.broadcast %cst_54 : f32 to vector<1x256xf32>
      %192 = arith.cmpf olt, %190, %191 : vector<1x256xf32>
      %cst_55 = arith.constant 5.000000e-01 : f32
      %193 = vector.broadcast %cst_55 : f32 to vector<1x256xf32>
      %194 = arith.mulf %193, %189 : vector<1x256xf32>
      %195 = arith.mulf %194, %189 : vector<1x256xf32>
      %cst_56 = arith.constant 5.000000e-01 : f32
      %196 = vector.broadcast %cst_56 : f32 to vector<1x256xf32>
      %197 = arith.subf %190, %196 : vector<1x256xf32>
      %198 = arith.select %192, %195, %197 : vector<1x256xi1>, vector<1x256xf32>
      %199 = arith.addf %187, %198 : vector<1x256xf32>
      %200 = vector.extract_strided_slice %164 {offsets = [3, 0], sizes = [1, 256], strides = [1, 1]} : vector<4x256xf32> to vector<1x256xf32>
      %201 = arith.subf %200, %161 : vector<1x256xf32>
      %202 = math.absf %201 : vector<1x256xf32>
      %cst_57 = arith.constant 1.000000e+00 : f32
      %203 = vector.broadcast %cst_57 : f32 to vector<1x256xf32>
      %204 = arith.cmpf olt, %202, %203 : vector<1x256xf32>
      %cst_58 = arith.constant 5.000000e-01 : f32
      %205 = vector.broadcast %cst_58 : f32 to vector<1x256xf32>
      %206 = arith.mulf %205, %201 : vector<1x256xf32>
      %207 = arith.mulf %206, %201 : vector<1x256xf32>
      %cst_59 = arith.constant 5.000000e-01 : f32
      %208 = vector.broadcast %cst_59 : f32 to vector<1x256xf32>
      %209 = arith.subf %202, %208 : vector<1x256xf32>
      %210 = arith.select %204, %207, %209 : vector<1x256xi1>, vector<1x256xf32>
      %211 = arith.addf %199, %210 : vector<1x256xf32>
      %212 = arith.index_cast %arg7 : i32 to index
      %c0_60 = arith.constant 0 : index
      %c0_61 = arith.constant 0 : index
      %213 = vector.load %arg5[%212, %c0_60, %c0_61] : memref<2x36x256xf32, #tpu.memory_space<vmem>>, vector<1x36x256xf32>
      %214 = vector.shape_cast %213 : vector<1x36x256xf32> to vector<36x256xf32>
      %cst_62 = arith.constant dense<0xFF800000> : vector<256xf32>
      %215 = vector.multi_reduction <maximumf>, %214, %cst_62 [0] : vector<36x256xf32> to vector<256xf32>
      %216 = vector.shape_cast %215 : vector<256xf32> to vector<1x256xf32>
      %217 = vector.broadcast %216 : vector<1x256xf32> to vector<36x256xf32>
      %218 = arith.subf %214, %217 : vector<36x256xf32>
      %219 = math.exp %218 : vector<36x256xf32>
      %cst_63 = arith.constant dense<0.000000e+00> : vector<256xf32>
      %220 = vector.multi_reduction <add>, %219, %cst_63 [0] : vector<36x256xf32> to vector<256xf32>
      %221 = vector.shape_cast %220 : vector<256xf32> to vector<1x256xf32>
      %222 = math.log %221 : vector<1x256xf32>
      %223 = arith.addf %222, %216 : vector<1x256xf32>
      %224 = vector.broadcast %134 : vector<1x256xi32> to vector<36x256xi32>
      %225 = arith.cmpi eq, %13, %224 : vector<36x256xi32>
      %cst_64 = arith.constant 0.000000e+00 : f32
      %226 = vector.broadcast %cst_64 : f32 to vector<36x256xf32>
      %227 = arith.select %225, %214, %226 : vector<36x256xi1>, vector<36x256xf32>
      %cst_65 = arith.constant dense<0.000000e+00> : vector<256xf32>
      %228 = vector.multi_reduction <add>, %227, %cst_65 [0] : vector<36x256xf32> to vector<256xf32>
      %229 = vector.shape_cast %228 : vector<256xf32> to vector<1x256xf32>
      %230 = arith.subf %223, %229 : vector<1x256xf32>
      %cst_66 = arith.constant 1.000000e+00 : f32
      %cst_67 = arith.constant 0.000000e+00 : f32
      %231 = vector.broadcast %cst_66 : f32 to vector<1x256xf32>
      %232 = vector.broadcast %cst_67 : f32 to vector<1x256xf32>
      %233 = arith.select %137, %231, %232 : vector<1x256xi1>, vector<1x256xf32>
      %cst_68 = arith.constant dense<0.000000e+00> : vector<1xf32>
      %234 = vector.multi_reduction <add>, %233, %cst_68 [1] : vector<1x256xf32> to vector<1xf32>
      %235 = vector.shape_cast %234 : vector<1xf32> to vector<1x1xf32>
      %cst_69 = arith.constant 0.000000e+00 : f32
      %236 = vector.broadcast %cst_69 : f32 to vector<1x256xf32>
      %237 = arith.select %137, %211, %236 : vector<1x256xi1>, vector<1x256xf32>
      %cst_70 = arith.constant dense<0.000000e+00> : vector<1xf32>
      %238 = vector.multi_reduction <add>, %237, %cst_70 [1] : vector<1x256xf32> to vector<1xf32>
      %239 = vector.shape_cast %238 : vector<1xf32> to vector<1x1xf32>
      %cst_71 = arith.constant 0.000000e+00 : f32
      %240 = vector.broadcast %cst_71 : f32 to vector<1x256xf32>
      %241 = arith.select %137, %230, %240 : vector<1x256xi1>, vector<1x256xf32>
      %cst_72 = arith.constant dense<0.000000e+00> : vector<1xf32>
      %242 = vector.multi_reduction <add>, %241, %cst_72 [1] : vector<1x256xf32> to vector<1xf32>
      %243 = vector.shape_cast %242 : vector<1xf32> to vector<1x1xf32>
      %cst_73 = arith.constant dense<true> : vector<1x256xi1>
      %244 = arith.xori %137, %cst_73 : vector<1x256xi1>
      %245 = arith.andi %244, %16 : vector<1x256xi1>
      %cst_74 = arith.constant 0.000000e+00 : f32
      %246 = vector.broadcast %cst_74 : f32 to vector<1x256xf32>
      %247 = arith.select %245, %230, %246 : vector<1x256xi1>, vector<1x256xf32>
      %cst_75 = arith.constant 0.000000e+00 : f32
      %248 = vector.broadcast %cst_75 : f32 to vector<1x256xf32>
      %249 = arith.maximumf %247, %248 : vector<1x256xf32>
      %cst_76 = arith.constant 3.000000e+00 : f32
      %250 = vector.broadcast %cst_76 : f32 to vector<1x1xf32>
      %251 = arith.mulf %250, %235 : vector<1x1xf32>
      %252 = tpu.bitcast %249 : vector<1x256xf32> -> vector<1x256xi32>
      %cst_77 = arith.constant dense<0xFF800000> : vector<1xf32>
      %253 = vector.multi_reduction <maximumf>, %249, %cst_77 [1] : vector<1x256xf32> to vector<1xf32>
      %254 = vector.shape_cast %253 : vector<1xf32> to vector<1x1xf32>
      %255 = tpu.bitcast %254 : vector<1x1xf32> -> vector<1x1xi32>
      %c1_i32_78 = arith.constant 1 : i32
      %256 = vector.broadcast %c1_i32_78 : i32 to vector<1x1xi32>
      %257 = arith.addi %255, %256 : vector<1x1xi32>
      %c0_i32_79 = arith.constant 0 : i32
      %258 = vector.broadcast %c0_i32_79 : i32 to vector<1x1xi32>
      %c0_i32_80 = arith.constant 0 : i32
      %c32_i32 = arith.constant 32 : i32
      %259 = arith.addi %c0_i32_80, %c32_i32 : i32
      %c1_i32_81 = arith.constant 1 : i32
      %260:2 = scf.for %arg9 = %c0_i32_80 to %259 step %c1_i32_81 iter_args(%arg10 = %258, %arg11 = %257) -> (vector<1x1xi32>, vector<1x1xi32>)  : i32 {
        %310 = arith.subi %arg11, %arg10 : vector<1x1xi32>
        %c1_i32_97 = arith.constant 1 : i32
        %311 = vector.broadcast %c1_i32_97 : i32 to vector<1x1xi32>
        %312 = arith.shrui %310, %311 : vector<1x1xi32>
        %313 = arith.addi %arg10, %312 : vector<1x1xi32>
        %314 = vector.broadcast %313 : vector<1x1xi32> to vector<1x256xi32>
        %315 = arith.cmpi sge, %252, %314 : vector<1x256xi32>
        %cst_98 = arith.constant 1.000000e+00 : f32
        %cst_99 = arith.constant 0.000000e+00 : f32
        %316 = vector.broadcast %cst_98 : f32 to vector<1x256xf32>
        %317 = vector.broadcast %cst_99 : f32 to vector<1x256xf32>
        %318 = arith.select %315, %316, %317 : vector<1x256xi1>, vector<1x256xf32>
        %cst_100 = arith.constant dense<0.000000e+00> : vector<1xf32>
        %319 = vector.multi_reduction <add>, %318, %cst_100 [1] : vector<1x256xf32> to vector<1xf32>
        %320 = vector.shape_cast %319 : vector<1xf32> to vector<1x1xf32>
        %321 = arith.cmpf oge, %320, %251 : vector<1x1xf32>
        %322 = arith.select %321, %313, %arg10 : vector<1x1xi1>, vector<1x1xi32>
        %323 = arith.select %321, %arg11, %313 : vector<1x1xi1>, vector<1x1xi32>
        scf.yield %322, %323 : vector<1x1xi32>, vector<1x1xi32>
      }
      %261 = tpu.bitcast %260#0 : vector<1x1xi32> -> vector<1x1xf32>
      %262 = vector.broadcast %261 : vector<1x1xf32> to vector<1x256xf32>
      %263 = arith.cmpf ogt, %249, %262 : vector<1x256xf32>
      %cst_82 = arith.constant 1.000000e+00 : f32
      %cst_83 = arith.constant 0.000000e+00 : f32
      %264 = vector.broadcast %cst_82 : f32 to vector<1x256xf32>
      %265 = vector.broadcast %cst_83 : f32 to vector<1x256xf32>
      %266 = arith.select %263, %264, %265 : vector<1x256xi1>, vector<1x256xf32>
      %cst_84 = arith.constant dense<0.000000e+00> : vector<1xf32>
      %267 = vector.multi_reduction <add>, %266, %cst_84 [1] : vector<1x256xf32> to vector<1xf32>
      %268 = vector.shape_cast %267 : vector<1xf32> to vector<1x1xf32>
      %cst_85 = arith.constant 0.000000e+00 : f32
      %269 = vector.broadcast %cst_85 : f32 to vector<1x256xf32>
      %270 = arith.select %263, %249, %269 : vector<1x256xi1>, vector<1x256xf32>
      %cst_86 = arith.constant dense<0.000000e+00> : vector<1xf32>
      %271 = vector.multi_reduction <add>, %270, %cst_86 [1] : vector<1x256xf32> to vector<1xf32>
      %272 = vector.shape_cast %271 : vector<1xf32> to vector<1x1xf32>
      %273 = arith.subf %251, %268 : vector<1x1xf32>
      %cst_87 = arith.constant 0.000000e+00 : f32
      %274 = vector.broadcast %cst_87 : f32 to vector<1x1xf32>
      %275 = arith.maximumf %273, %274 : vector<1x1xf32>
      %276 = arith.mulf %275, %261 : vector<1x1xf32>
      %277 = arith.addf %272, %276 : vector<1x1xf32>
      %cst_88 = arith.constant 5.000000e-01 : f32
      %278 = vector.broadcast %cst_88 : f32 to vector<1x1xf32>
      %279 = arith.cmpf ogt, %251, %278 : vector<1x1xf32>
      %cst_89 = arith.constant 0.000000e+00 : f32
      %280 = vector.broadcast %cst_89 : f32 to vector<1x1xf32>
      %281 = arith.select %279, %277, %280 : vector<1x1xi1>, vector<1x1xf32>
      %c0_i32_90 = arith.constant 0 : i32
      %282 = vector.broadcast %c0_i32_90 : i32 to vector<1x128xi32>
      %283 = arith.cmpi eq, %17, %282 : vector<1x128xi32>
      %cst_91 = arith.constant 0.000000e+00 : f32
      %284 = vector.shape_cast %235 : vector<1x1xf32> to vector<1x1xf32>
      %285 = vector.broadcast %284 : vector<1x1xf32> to vector<1x128xf32>
      %286 = vector.broadcast %cst_91 : f32 to vector<1x128xf32>
      %287 = arith.select %283, %285, %286 : vector<1x128xi1>, vector<1x128xf32>
      %c1_i32_92 = arith.constant 1 : i32
      %288 = vector.broadcast %c1_i32_92 : i32 to vector<1x128xi32>
      %289 = arith.cmpi eq, %17, %288 : vector<1x128xi32>
      %cst_93 = arith.constant 0.000000e+00 : f32
      %290 = vector.shape_cast %239 : vector<1x1xf32> to vector<1x1xf32>
      %291 = vector.broadcast %290 : vector<1x1xf32> to vector<1x128xf32>
      %292 = vector.broadcast %cst_93 : f32 to vector<1x128xf32>
      %293 = arith.select %289, %291, %292 : vector<1x128xi1>, vector<1x128xf32>
      %294 = arith.addf %287, %293 : vector<1x128xf32>
      %c2_i32_94 = arith.constant 2 : i32
      %295 = vector.broadcast %c2_i32_94 : i32 to vector<1x128xi32>
      %296 = arith.cmpi eq, %17, %295 : vector<1x128xi32>
      %cst_95 = arith.constant 0.000000e+00 : f32
      %297 = vector.shape_cast %243 : vector<1x1xf32> to vector<1x1xf32>
      %298 = vector.broadcast %297 : vector<1x1xf32> to vector<1x128xf32>
      %299 = vector.broadcast %cst_95 : f32 to vector<1x128xf32>
      %300 = arith.select %296, %298, %299 : vector<1x128xi1>, vector<1x128xf32>
      %301 = arith.addf %294, %300 : vector<1x128xf32>
      %c3_i32 = arith.constant 3 : i32
      %302 = vector.broadcast %c3_i32 : i32 to vector<1x128xi32>
      %303 = arith.cmpi eq, %17, %302 : vector<1x128xi32>
      %cst_96 = arith.constant 0.000000e+00 : f32
      %304 = vector.shape_cast %281 : vector<1x1xf32> to vector<1x1xf32>
      %305 = vector.broadcast %304 : vector<1x1xf32> to vector<1x128xf32>
      %306 = vector.broadcast %cst_96 : f32 to vector<1x128xf32>
      %307 = arith.select %303, %305, %306 : vector<1x128xi1>, vector<1x128xf32>
      %308 = arith.addf %301, %307 : vector<1x128xf32>
      %309 = arith.addf %arg8, %308 : vector<1x128xf32>
      scf.yield %309 : vector<1x128xf32>
    }
    %c2_i32_11 = arith.constant 2 : i32
    %21 = tpu.iota {dimensions = array<i32: 0>} : vector<8x128xi32>
    %c0_i32_12 = arith.constant 0 : i32
    %22 = vector.broadcast %c0_i32_12 : i32 to vector<8x128xi32>
    %23 = arith.cmpi eq, %21, %22 : vector<8x128xi32>
    %cst_13 = arith.constant 0.000000e+00 : f32
    %24 = vector.shape_cast %20 : vector<1x128xf32> to vector<1x128xf32>
    %25 = vector.broadcast %24 : vector<1x128xf32> to vector<8x128xf32>
    %26 = vector.broadcast %cst_13 : f32 to vector<8x128xf32>
    %27 = arith.select %23, %25, %26 : vector<8x128xi1>, vector<8x128xf32>
    %c0_14 = arith.constant 0 : index
    %c0_15 = arith.constant 0 : index
    %c0_16 = arith.constant 0 : index
    %28 = vector.load %arg6[%c0_14, %c0_15, %c0_16] : memref<1x8x128xf32, #tpu.memory_space<vmem>>, vector<1x8x128xf32>
    %29 = vector.shape_cast %28 : vector<1x8x128xf32> to vector<8x128xf32>
    %30 = vector.shape_cast %27 : vector<8x128xf32> to vector<1x8x128xf32>
    tpu.vector_store %arg6[%c0_14, %c0_15, %c0_16], %30 {strides = array<i32>} : memref<1x8x128xf32, #tpu.memory_space<vmem>>, vector<1x8x128xf32>,
    return
  }
  func.func @transform_0(%arg0: i32) -> (i32, i32, i32) {
    %c0_i32 = arith.constant 0 : i32
    %c0_i32_0 = arith.constant 0 : i32
    %c0_i32_1 = arith.constant 0 : i32
    return %arg0, %c0_i32, %c0_i32_0 : i32, i32, i32
  }
  func.func @transform_1(%arg0: i32) -> (i32, i32, i32) {
    %c0_i32 = arith.constant 0 : i32
    %c0_i32_0 = arith.constant 0 : i32
    %c0_i32_1 = arith.constant 0 : i32
    return %arg0, %c0_i32, %c0_i32_0 : i32, i32, i32
  }
  func.func @transform_2(%arg0: i32) -> (i32, i32) {
    %c0_i32 = arith.constant 0 : i32
    %c0_i32_0 = arith.constant 0 : i32
    %c0_i32_1 = arith.constant 0 : i32
    return %c0_i32, %c0_i32_0 : i32, i32
  }
  func.func @transform_3(%arg0: i32) -> (i32, i32, i32) {
    %c0_i32 = arith.constant 0 : i32
    %c0_i32_0 = arith.constant 0 : i32
    %c0_i32_1 = arith.constant 0 : i32
    return %arg0, %c0_i32, %c0_i32_0 : i32, i32, i32
  }
  func.func @transform_4(%arg0: i32) -> (i32, i32, i32) {
    %c0_i32 = arith.constant 0 : i32
    %c0_i32_0 = arith.constant 0 : i32
    %c0_i32_1 = arith.constant 0 : i32
    return %arg0, %c0_i32, %c0_i32_0 : i32, i32, i32
  }
  func.func @transform_5(%arg0: i32) -> (i32, i32, i32) {
    %c0_i32 = arith.constant 0 : i32
    %c0_i32_0 = arith.constant 0 : i32
    %c0_i32_1 = arith.constant 0 : i32
    return %arg0, %c0_i32, %c0_i32_0 : i32, i32, i32
  }
}

</mosaic_0001>

<llo_original>
// kernel: multibox_loss.1
$region0: #{multibox_loss.1}
  #allocation0 [shape = 'u32[]', space=smem, size = 0x4, offset = 0x4, fixed_abs, tag = 'smem constant byte address 0x4 - core index']
  #allocation1 [shape = 'u32[144,128]{1,0:T(1,128)}', space=vmem, size = 0x12000, scoped, tag = 'internal scratch']
  %s0 = inlined_call_operand.vmem [shape: f32[4,8,8], index: 0, kind: input, shape index: {}]
  %s1 = inlined_call_operand.vmem [shape: f32[4,8,8], index: 1, kind: input, shape index: {}]
  %s2 = inlined_call_operand.vmem [shape: f32[16,256], index: 2, kind: input, shape index: {}]
  %s3 = inlined_call_operand.vmem [shape: f32[4,4,256], index: 3, kind: input, shape index: {}]
  %s4 = inlined_call_operand.vmem [shape: f32[4,36,256], index: 4, kind: input, shape index: {}]
  %s5 = inlined_call_operand.vmem [shape: f32[2,8,128], index: 5, kind: output, shape index: {}]
  %s6 = sld [smem:[#allocation0]]
  $region67: #{multibox_loss.1} parent=0
    _
  %s8 = ssub.s32 1, %s6
  %s9 = scalar_select 0, %s8, %s6
  loop: start=0, step=1, limit=4
  $region2: #{multibox_loss.1} parent=0 // loop_pre_header
    _
  $region3: #{multibox_loss.1} parent=0 // loop_header
    %s11 = sphi 0, %s15
    %p12 = scmp.ge.s32.totalorder %s11, 4
    %s21 = sphi 0, %s23
    %s24 = sphi 0, %s21
    %s25 = sphi 0, %s24
    %s41 = sphi 0, %s25
    %s47 = sphi 0, %s49
    %s50 = sphi 0, %s47
    %s51 = sphi 0, %s50
    %s67 = sphi 0, %s51
    %s71 = sphi 0, %s71
    %s73 = sphi 0, %s71
    %s74 = sphi 0, %s73
    %s88 = sphi 0, %s74
    %s94 = sphi 0, %s96
    %s97 = sphi 0, %s94
    %s98 = sphi 0, %s97
    %s114 = sphi 0, %s98
    %s120 = sphi 0, %s122
    %s123 = sphi 0, %s120
    %s124 = sphi 0, %s123
    %s140 = sphi 0, %s124
    %s146 = sphi 0, %s148
    %s149 = sphi 0, %s146
    %s150 = sphi 0, %s149
    %s166 = sphi 0, %s150
  $region4: #{multibox_loss.1} parent=0 // loop_header_branch
    %14 = sbr.rel (%p12) target = $region8
  $region5: #{multibox_loss.1} parent=0 // loop_body
    %s16 = ssub.s32 %s11, 1
    %s17 = ssub.s32 %s11, 2
    %s18 = sadd.s32 %s11, 1
    %s19 = ssub.s32 %s11, %s18
    %p20 = scmp.eq.s32.totalorder %s19, 0
    %s22 = sadd.s32 %s21, 1
    %s23 = scalar_select %p20, %s21, %s22
    %p26 = pneg %p20
    %p27 = scmp.eq.s32.totalorder %s11, 1
    %p28 = por %p26, %p27
    %p29 = scmp.ne.s32.totalorder %s21, %s24
    %p30 = scmp.eq.s32.totalorder %s11, 0
    %p31 = por %p29, %p30
    %p32 = scmp.ne.s32.totalorder %s21, %s24
    %p33 = scmp.eq.s32.totalorder %s16, 1
    %p34 = por %p32, %p33
    %p35 = scmp.ne.s32.totalorder %s24, %s25
    %p36 = scmp.eq.s32.totalorder %s16, 0
    %p37 = por %p35, %p36
    %p38 = scmp.ne.s32.totalorder %s24, %s25
    %p39 = scmp.eq.s32.totalorder %s17, 1
    %p40 = por %p38, %p39
    %p42 = scmp.ne.s32.totalorder %s25, %s41
    %p43 = scmp.eq.s32.totalorder %s17, 0
    %p44 = por %p42, %p43
    %s45 = ssub.s32 %s11, %s18
    %p46 = scmp.eq.s32.totalorder %s45, 0
    %s48 = sadd.s32 %s47, 1
    %s49 = scalar_select %p46, %s47, %s48
    %p52 = pneg %p46
    %p53 = scmp.eq.s32.totalorder %s11, 1
    %p54 = por %p52, %p53
    %p55 = scmp.ne.s32.totalorder %s47, %s50
    %p56 = scmp.eq.s32.totalorder %s11, 0
    %p57 = por %p55, %p56
    %p58 = scmp.ne.s32.totalorder %s47, %s50
    %p59 = scmp.eq.s32.totalorder %s16, 1
    %p60 = por %p58, %p59
    %p61 = scmp.ne.s32.totalorder %s50, %s51
    %p62 = scmp.eq.s32.totalorder %s16, 0
    %p63 = por %p61, %p62
    %p64 = scmp.ne.s32.totalorder %s50, %s51
    %p65 = scmp.eq.s32.totalorder %s17, 1
    %p66 = por %p64, %p65
    %p68 = scmp.ne.s32.totalorder %s51, %s67
    %p69 = scmp.eq.s32.totalorder %s17, 0
    %p70 = por %p68, %p69
    %s72 = sadd.s32 %s71, 1
    %p75 = scmp.eq.s32.totalorder %s11, 1
    %p76 = scmp.ne.s32.totalorder %s71, %s73
    %p77 = scmp.eq.s32.totalorder %s11, 0
    %p78 = por %p76, %p77
    %p79 = scmp.ne.s32.totalorder %s71, %s73
    %p80 = scmp.eq.s32.totalorder %s16, 1
    %p81 = por %p79, %p80
    %p82 = scmp.ne.s32.totalorder %s73, %s74
    %p83 = scmp.eq.s32.totalorder %s16, 0
    %p84 = por %p82, %p83
    %p85 = scmp.ne.s32.totalorder %s73, %s74
    %p86 = scmp.eq.s32.totalorder %s17, 1
    %p87 = por %p85, %p86
    %p89 = scmp.ne.s32.totalorder %s74, %s88
    %p90 = scmp.eq.s32.totalorder %s17, 0
    %p91 = por %p89, %p90
    %s92 = ssub.s32 %s11, %s18
    %p93 = scmp.eq.s32.totalorder %s92, 0
    %s95 = sadd.s32 %s94, 1
    %s96 = scalar_select %p93, %s94, %s95
    %p99 = pneg %p93
    %p100 = scmp.eq.s32.totalorder %s11, 1
    %p101 = por %p99, %p100
    %p102 = scmp.ne.s32.totalorder %s94, %s97
    %p103 = scmp.eq.s32.totalorder %s11, 0
    %p104 = por %p102, %p103
    %p105 = scmp.ne.s32.totalorder %s94, %s97
    %p106 = scmp.eq.s32.totalorder %s16, 1
    %p107 = por %p105, %p106
    %p108 = scmp.ne.s32.totalorder %s97, %s98
    %p109 = scmp.eq.s32.totalorder %s16, 0
    %p110 = por %p108, %p109
    %p111 = scmp.ne.s32.totalorder %s97, %s98
    %p112 = scmp.eq.s32.totalorder %s17, 1
    %p113 = por %p111, %p112
    %p115 = scmp.ne.s32.totalorder %s98, %s114
    %p116 = scmp.eq.s32.totalorder %s17, 0
    %p117 = por %p115, %p116
    %s118 = ssub.s32 %s11, %s18
    %p119 = scmp.eq.s32.totalorder %s118, 0
    %s121 = sadd.s32 %s120, 1
    %s122 = scalar_select %p119, %s120, %s121
    %p125 = pneg %p119
    %p126 = scmp.eq.s32.totalorder %s11, 1
    %p127 = por %p125, %p126
    %p128 = scmp.ne.s32.totalorder %s120, %s123
    %p129 = scmp.eq.s32.totalorder %s11, 0
    %p130 = por %p128, %p129
    %p131 = scmp.ne.s32.totalorder %s120, %s123
    %p132 = scmp.eq.s32.totalorder %s16, 1
    %p133 = por %p131, %p132
    %p134 = scmp.ne.s32.totalorder %s123, %s124
    %p135 = scmp.eq.s32.totalorder %s16, 0
    %p136 = por %p134, %p135
    %p137 = scmp.ne.s32.totalorder %s123, %s124
    %p138 = scmp.eq.s32.totalorder %s17, 1
    %p139 = por %p137, %p138
    %p141 = scmp.ne.s32.totalorder %s124, %s140
    %p142 = scmp.eq.s32.totalorder %s17, 0
    %p143 = por %p141, %p142
    %s144 = ssub.s32 %s11, %s18
    %p145 = scmp.eq.s32.totalorder %s144, 0
    %s147 = sadd.s32 %s146, 1
    %s148 = scalar_select %p145, %s146, %s147
    %p151 = pneg %p145
    %p152 = scmp.eq.s32.totalorder %s11, 1
    %p153 = por %p151, %p152
    %p154 = scmp.ne.s32.totalorder %s146, %s149
    %p155 = scmp.eq.s32.totalorder %s11, 0
    %p156 = por %p154, %p155
    %p157 = scmp.ne.s32.totalorder %s146, %s149
    %p158 = scmp.eq.s32.totalorder %s16, 1
    %p159 = por %p157, %p158
    %p160 = scmp.ne.s32.totalorder %s149, %s150
    %p161 = scmp.eq.s32.totalorder %s16, 0
    %p162 = por %p160, %p161
    %p163 = scmp.ne.s32.totalorder %s149, %s150
    %p164 = scmp.eq.s32.totalorder %s17, 1
    %p165 = por %p163, %p164
    %p167 = scmp.ne.s32.totalorder %s150, %s166
    %p168 = scmp.eq.s32.totalorder %s17, 0
    %p169 = por %p167, %p168
    %p170 = scmp.le.s32.totalorder 1, %s11
    %p171 = scmp.lt.s32.totalorder %s11, 3
    %p172 = pnand %p170, %p171
    %p173 = pneg %p172
    // Predicated region
    $region9: #{multibox_loss.1} parent=5 // pred_check
      _
    $region10: #{multibox_loss.1} parent=5 // pred_check_branch
      %175 = sbr.rel (%p172) target = $region12
    $region11: #{multibox_loss.1} parent=5 // pred_region
      %s176 = ssub.s32 %s11, 1
      // Predicated region
      $region13: #{multibox_loss.1} parent=11 // pred_check
        %p177 = pneg %p84
      $region14: #{multibox_loss.1} parent=11 // pred_check_branch
        %179 = sbr.rel (%p177) target = $region16
      $region15: #{multibox_loss.1} parent=11 // pred_region
        _
      $region16: #{multibox_loss.1} parent=11 // pred_fallthru
        _
    $region12: #{multibox_loss.1} parent=5 // pred_fallthru
      _
    %p180 = scmp.lt.s32.totalorder %s11, 2
    // Predicated region
    $region17: #{multibox_loss.1} parent=5 // pred_check
      %p181 = pneg %p180
    $region18: #{multibox_loss.1} parent=5 // pred_check_branch
      %183 = sbr.rel (%p181) target = $region20
    $region19: #{multibox_loss.1} parent=5 // pred_region
      // Predicated region
      $region21: #{multibox_loss.1} parent=19 // pred_check
        %p184 = pneg %p31
      $region22: #{multibox_loss.1} parent=19 // pred_check_branch
        %186 = sbr.rel (%p184) target = $region24
      $region23: #{multibox_loss.1} parent=19 // pred_region
        %s187 = smul.u32 2, %s11
        %p188 = scmp.lt.s32.totalorder %s187, 3
        %s189 = scalar_select %p188, %s187, 3
        %s190 = smul.addr %s189, 8
        %s191 = scalar_lea.vmem %s0, %s190
        %s192 = smul.u32 2, %s11
      $region24: #{multibox_loss.1} parent=19 // pred_fallthru
        _
      // Predicated region
      $region25: #{multibox_loss.1} parent=19 // pred_check
        %p193 = pneg %p57
      $region26: #{multibox_loss.1} parent=19 // pred_check_branch
        %195 = sbr.rel (%p193) target = $region28
      $region27: #{multibox_loss.1} parent=19 // pred_region
        %s196 = smul.u32 2, %s11
        %p197 = scmp.lt.s32.totalorder %s196, 3
        %s198 = scalar_select %p197, %s196, 3
        %s199 = smul.addr %s198, 8
        %s200 = scalar_lea.vmem %s1, %s199
        %s201 = smul.u32 2, %s11
      $region28: #{multibox_loss.1} parent=19 // pred_fallthru
        _
      // Predicated region
      $region29: #{multibox_loss.1} parent=19 // pred_check
        %p202 = pneg %p104
      $region30: #{multibox_loss.1} parent=19 // pred_check_branch
        %204 = sbr.rel (%p202) target = $region32
      $region31: #{multibox_loss.1} parent=19 // pred_region
        %s205 = smul.u32 2, %s11
        %p206 = scmp.lt.s32.totalorder %s205, 3
        %s207 = scalar_select %p206, %s205, 3
        %s208 = smul.addr %s207, 2
        %s209 = smul.addr %s208, 4
        %s210 = scalar_lea.vmem %s3, %s209
        %s211 = smul.u32 2, %s11
      $region32: #{multibox_loss.1} parent=19 // pred_fallthru
        _
      // Predicated region
      $region33: #{multibox_loss.1} parent=19 // pred_check
        %p212 = pneg %p130
      $region34: #{multibox_loss.1} parent=19 // pred_check_branch
        %214 = sbr.rel (%p212) target = $region36
      $region35: #{multibox_loss.1} parent=19 // pred_region
        %s215 = smul.u32 2, %s11
        %p216 = scmp.lt.s32.totalorder %s215, 3
        %s217 = scalar_select %p216, %s215, 3
        %s218 = smul.addr %s217, 10
        %s219 = smul.addr %s218, 8
        %s220 = scalar_lea.vmem %s4, %s219
        %s221 = smul.u32 2, %s11
      $region36: #{multibox_loss.1} parent=19 // pred_fallthru
        _
    $region20: #{multibox_loss.1} parent=5 // pred_fallthru
      _
    %p222 = scmp.le.s32.totalorder 1, %s11
    %p223 = scmp.lt.s32.totalorder %s11, 3
    %p224 = pnand %p222, %p223
    %p225 = pneg %p224
    // Predicated region
    $region37: #{multibox_loss.1} parent=5 // pred_check
      _
    $region38: #{multibox_loss.1} parent=5 // pred_check_branch
      %227 = sbr.rel (%p224) target = $region40
    $region39: #{multibox_loss.1} parent=5 // pred_region
      %s228 = ssub.s32 %s11, 1
      %s229 = smul.u32 2, %s16
      %p230 = scmp.lt.s32.totalorder %s229, 3
      %s231 = scalar_select %p230, %s229, 3
      %s232 = smul.addr %s231, 8
      %s233 = scalar_lea.vmem %s0, %s232
      %p234 = pneg %p37
      %p235 = pneg %p34
      %s236 = smul.u32 2, %s16
      %p237 = scmp.lt.s32.totalorder %s236, 3
      %s238 = scalar_select %p237, %s236, 3
      %s239 = smul.addr %s238, 8
      %s240 = scalar_lea.vmem %s1, %s239
      %p241 = pneg %p63
      %p242 = pneg %p60
      %p243 = pneg %p84
      %p244 = pneg %p81
      %s245 = smul.u32 2, %s16
      %p246 = scmp.lt.s32.totalorder %s245, 3
      %s247 = scalar_select %p246, %s245, 3
      %s248 = smul.addr %s247, 2
      %s249 = smul.addr %s248, 4
      %s250 = scalar_lea.vmem %s3, %s249
      %p251 = pneg %p110
      %p252 = pneg %p107
      %s253 = smul.u32 2, %s16
      %p254 = scmp.lt.s32.totalorder %s253, 3
      %s255 = scalar_select %p254, %s253, 3
      %s256 = smul.addr %s255, 10
      %s257 = smul.addr %s256, 8
      %s258 = scalar_lea.vmem %s4, %s257
      %p259 = pneg %p136
      %p260 = pneg %p133
      %p261 = pneg %p162
      %p262 = pneg %p159
      %p263 = scmp.lt.s32.totalorder %s16, 1
      %s264 = scalar_select %p263, %s16, 1
      %s265 = smul.addr %s264, 8
      %s266 = scalar_lea.vmem %s5, %s265
      %s267 = smul.u32 2, %s16
      %p268 = scmp.lt.s32.totalorder %s267, 3
      %s269 = scalar_select %p268, %s267, 3
      %s270 = smul.addr %s269, 8
      %s271 = scalar_lea.vmem %s0, %s270
      %s272 = smul.u32 2, %s16
      %s273 = smul.u32 2, %s16
      %p274 = scmp.lt.s32.totalorder %s273, 3
      %s275 = scalar_select %p274, %s273, 3
      %s276 = smul.addr %s275, 8
      %s277 = scalar_lea.vmem %s1, %s276
      %s278 = smul.u32 2, %s16
      %s279 = smul.u32 2, %s16
      %p280 = scmp.lt.s32.totalorder %s279, 3
      %s281 = scalar_select %p280, %s279, 3
      %s282 = smul.addr %s281, 2
      %s283 = smul.addr %s282, 4
      %s284 = scalar_lea.vmem %s3, %s283
      %s285 = smul.u32 2, %s16
      %s286 = smul.u32 2, %s16
      %p287 = scmp.lt.s32.totalorder %s286, 3
      %s288 = scalar_select %p287, %s286, 3
      %s289 = smul.addr %s288, 10
      %s290 = smul.addr %s289, 8
      %s291 = scalar_lea.vmem %s4, %s290
      %s292 = smul.u32 2, %s16
      %p293 = scmp.lt.s32.totalorder %s16, 1
      %s294 = scalar_select %p293, %s16, 1
      %s295 = smul.addr %s294, 8
      %s296 = scalar_lea.vmem %s5, %s295
      %v297 = vld [vmem:[%s2] ss:$8 sm:$0x3]
      %s298 = scalar_lea.vmem %s2, 1
      %v299 = vld [vmem:[%s298] ss:$8 sm:$0x3]
      %s300 = scalar_lea.vmem %s2, 2
      %v301 = vld [vmem:[%s300] ss:$8 sm:$0x3]
      %s302 = scalar_lea.vmem %s2, 3
      %v303 = vld [vmem:[%s302] ss:$8 sm:$0x3]
      %s304 = scalar_lea.vmem %s2, 4
      %v305 = vld [vmem:[%s304] ss:$8 sm:$0x3]
      %s306 = scalar_lea.vmem %s2, 5
      %v307 = vld [vmem:[%s306] ss:$8 sm:$0x3]
      %s308 = scalar_lea.vmem %s2, 6
      %v309 = vld [vmem:[%s308] ss:$8 sm:$0x3]
      %s310 = scalar_lea.vmem %s2, 7
      %v311 = vld [vmem:[%s310] ss:$8 sm:$0x3]
      %s312 = scalar_lea.vmem %s2, 16
      %v313 = vld [vmem:[%s312] ss:$8 sm:$0x3]
      %s314 = scalar_lea.vmem %s2, 17
      %v315 = vld [vmem:[%s314] ss:$8 sm:$0x3]
      %s316 = scalar_lea.vmem %s2, 18
      %v317 = vld [vmem:[%s316] ss:$8 sm:$0x3]
      %v318 = vlaneseq
      %v319 = vshrl.u32 %v318, 7
      %v320 = vlaneseq
      %v321 = vand.u32 %v320, 127
      %v322 = vadd.s32 %v321, 128
      %v323 = vadd.s32 %v319, 8
      %v324 = vadd.s32 %v319, 16
      %v325 = vadd.s32 %v319, 24
      %v326 = vadd.s32 %v319, 32
      %vm327 = vcmp.lt.s32.totalorder %v321, 225
      %vm328 = vcmp.lt.s32.totalorder %v322, 225
      loop: start=0, step=1, limit=2
      $region41: #{multibox_loss.1} parent=39 // loop_pre_header
        _
      $region42: #{multibox_loss.1} parent=39 // loop_header
        %s330 = sphi 0, %s334
        %p331 = scmp.ge.s32.totalorder %s330, 2
        %v335 = vphi 0.0, %v1080
      $region43: #{multibox_loss.1} parent=39 // loop_header_branch
        %333 = sbr.rel (%p331) target = $region47
      $region44: #{multibox_loss.1} parent=39 // loop_body
        %s336 = smul.u32 %s330, 8
        %s337 = scalar_lea.vmem %s271, %s336
        %v338 = vld [vmem:[%s337] sm:$0xff]
        %vm339 = vcmp.gt.f32.partialorder %v338, 0.5
        %341 = vset.pattern.permute.xlu0 2
        %342 = vperm.xlu0 %341, %v338
        %v343 = vpop.permute.xlu0 %342
        %v346 = vlaneseq
        %v347 = vshrl.u32 %v346, 7
        %v348 = vsub.s32 0, %v347
        %v349 = vrot.slane %v301, %v348
        %v350 = vlaneseq
        %v351 = vshrl.u32 %v350, 7
        %v352 = vsub.s32 1, %v351
        %v353 = vrot.slane %v301, %v352
        %v356 = vmin.f32 %v343, %v349
        %v357 = vmin.f32 %v343, %v353
        %358 = vset.pattern.permute.xlu0 0
        %359 = vperm.xlu0 %358, %v338
        %v360 = vpop.permute.xlu0 %359
        %v363 = vlaneseq
        %v364 = vshrl.u32 %v363, 7
        %v365 = vsub.s32 0, %v364
        %v366 = vrot.slane %v297, %v365
        %v367 = vlaneseq
        %v368 = vshrl.u32 %v367, 7
        %v369 = vsub.s32 1, %v368
        %v370 = vrot.slane %v297, %v369
        %v373 = vmax.f32 %v360, %v366
        %v374 = vmax.f32 %v360, %v370
        %v375 = vsub.f32 %v356, %v373
        %v376 = vsub.f32 %v357, %v374
        %v377 = vmax.f32 %v375, 0.0
        %v378 = vmax.f32 %v376, 0.0
        %379 = vset.pattern.permute.xlu0 3
        %380 = vperm.xlu0 %379, %v338
        %v381 = vpop.permute.xlu0 %380
        %v384 = vlaneseq
        %v385 = vshrl.u32 %v384, 7
        %v386 = vsub.s32 0, %v385
        %v387 = vrot.slane %v303, %v386
        %v388 = vlaneseq
        %v389 = vshrl.u32 %v388, 7
        %v390 = vsub.s32 1, %v389
        %v391 = vrot.slane %v303, %v390
        %v394 = vmin.f32 %v381, %v387
        %v395 = vmin.f32 %v381, %v391
        %396 = vset.pattern.permute.xlu0 1
        %397 = vperm.xlu0 %396, %v338
        %v398 = vpop.permute.xlu0 %397
        %v401 = vlaneseq
        %v402 = vshrl.u32 %v401, 7
        %v403 = vsub.s32 0, %v402
        %v404 = vrot.slane %v299, %v403
        %v405 = vlaneseq
        %v406 = vshrl.u32 %v405, 7
        %v407 = vsub.s32 1, %v406
        %v408 = vrot.slane %v299, %v407
        %v411 = vmax.f32 %v398, %v404
        %v412 = vmax.f32 %v398, %v408
        %v413 = vsub.f32 %v394, %v411
        %v414 = vsub.f32 %v395, %v412
        %v415 = vmax.f32 %v413, 0.0
        %v416 = vmax.f32 %v414, 0.0
        %v417 = vmul.f32 %v377, %v415
        %v418 = vmul.f32 %v378, %v416
        %419 = vset.pattern.permute.xlu0 6
        %420 = vperm.xlu0 %419, %v338
        %v421 = vpop.permute.xlu0 %420
        %v424 = vlaneseq
        %v425 = vshrl.u32 %v424, 7
        %v426 = vsub.s32 0, %v425
        %v427 = vrot.slane %v317, %v426
        %v428 = vlaneseq
        %v429 = vshrl.u32 %v428, 7
        %v430 = vsub.s32 1, %v429
        %v431 = vrot.slane %v317, %v430
        %v434 = vadd.f32 %v421, %v427
        %v435 = vadd.f32 %v421, %v431
        %v436 = vsub.f32 %v434, %v417
        %v437 = vsub.f32 %v435, %v418
        %v438 = vmax.f32 %v436, 1e-10
        %v439 = vmax.f32 %v437, 1e-10
        %v440 = vrcp.pop %v438
        %v441 = vmul.f32 %v417, %v440
        %v442 = vrcp.pop %v439
        %v443 = vmul.f32 %v418, %v442
        %v444 = vsel %vm339, 1, 0
        %445 = vset.pattern.permute.xlu0 5
        %446 = vperm.xlu0 %445, %v444
        %v447 = vpop.permute.xlu0 %446
        %vm448 = vcmp.eq.s32.totalorder %v447, 1
        %v449 = vsel %vm448, %v441, -1.0
        %v450 = vsel %vm448, %v443, -1.0
        %v451 = vrot.slane %v449, 4
        %v452 = vmax.f32 %v449, %v451
        %v453 = vrot.slane %v452, 2
        %v454 = vmax.f32 %v452, %v453
        %v455 = vrot.slane %v454, 1
        %v456 = vmax.f32 %v454, %v455
        %v457 = vrot.slane %v450, 4
        %v458 = vmax.f32 %v450, %v457
        %v459 = vrot.slane %v458, 2
        %v460 = vmax.f32 %v458, %v459
        %v461 = vrot.slane %v460, 1
        %v462 = vmax.f32 %v460, %v461
        %vm463 = vcmp.ge.f32.partialorder %v449, %v456
        %vm464 = vcmp.ge.f32.partialorder %v450, %v462
        %v465 = vsel %vm463, %v319, 8
        %v466 = vsel %vm464, %v319, 8
        %v467 = vrot.slane %v465, 4
        %vm468 = vcmp.lt.s32.totalorder %v465, %v467
        %v469 = vsel %vm468, %v465, %v467
        %v470 = vrot.slane %v469, 2
        %vm471 = vcmp.lt.s32.totalorder %v469, %v470
        %v472 = vsel %vm471, %v469, %v470
        %v473 = vrot.slane %v472, 1
        %vm474 = vcmp.lt.s32.totalorder %v472, %v473
        %v475 = vsel %vm474, %v472, %v473
        %v476 = vrot.slane %v466, 4
        %vm477 = vcmp.lt.s32.totalorder %v466, %v476
        %v478 = vsel %vm477, %v466, %v476
        %v479 = vrot.slane %v478, 2
        %vm480 = vcmp.lt.s32.totalorder %v478, %v479
        %v481 = vsel %vm480, %v478, %v479
        %v482 = vrot.slane %v481, 1
        %vm483 = vcmp.lt.s32.totalorder %v481, %v482
        %v484 = vsel %vm483, %v481, %v482
        %v485 = vmax.f32 %v449, %v450
        %486 = vmax.xlane.f32.xlu0 %v485
        %v487 = vpop.xlane.xlu0 %486
        %vm488 = vcmp.ge.f32.partialorder %v449, %v487
        %vm489 = vcmp.ge.f32.partialorder %v450, %v487
        %v490 = vsel %vm488, %v321, 256
        %v491 = vsel %vm489, %v322, 256
        %vm492 = vcmp.lt.s32.totalorder %v490, %v491
        %v493 = vsel %vm492, %v490, %v491
        %v494 = vand.u32 %v493, 65535
        %v495 = vshra.s32 %v493, 16
        %v496 = vcvt.s32.f32 %v494
        %v497 = vcvt.s32.f32 %v495
        %498 = vmin.xlane.f32.xlu0 %v497
        %v499 = vpop.xlane.xlu0 %498
        %vm500 = vcmp.eq.f32.partialorder %v497, %v499
        %v501 = vsel %vm500, %v496, inf
        %502 = vmin.xlane.f32.xlu0 %v501
        %v503 = vpop.xlane.xlu0 %502
        %v504 = vcvt.f32.s32 %v503
        %v505 = vcvt.f32.s32 %v499
        %v506 = vshll.u32 %v505, 16
        %v507 = vadd.s32 %v506, %v504
        %vm508 = vcmp.eq.s32.totalorder %v507, %v321
        %vm509 = vcmp.eq.s32.totalorder %v507, %v322
        %vm510 = vmand %vm448, %vm508
        %vm511 = vmand %vm448, %vm509
        %v512 = vsel %vm510, %v319, 4294967295
        %v513 = vsel %vm511, %v319, 4294967295
        %v514 = vrot.slane %v512, 4
        %vm515 = vcmp.gt.s32.totalorder %v512, %v514
        %v516 = vsel %vm515, %v512, %v514
        %v517 = vrot.slane %v516, 2
        %vm518 = vcmp.gt.s32.totalorder %v516, %v517
        %v519 = vsel %vm518, %v516, %v517
        %v520 = vrot.slane %v519, 1
        %vm521 = vcmp.gt.s32.totalorder %v519, %v520
        %v522 = vsel %vm521, %v519, %v520
        %v523 = vrot.slane %v513, 4
        %vm524 = vcmp.gt.s32.totalorder %v513, %v523
        %v525 = vsel %vm524, %v513, %v523
        %v526 = vrot.slane %v525, 2
        %vm527 = vcmp.gt.s32.totalorder %v525, %v526
        %v528 = vsel %vm527, %v525, %v526
        %v529 = vrot.slane %v528, 1
        %vm530 = vcmp.gt.s32.totalorder %v528, %v529
        %v531 = vsel %vm530, %v528, %v529
        %vm532 = vcmp.ge.s32.totalorder %v522, 0
        %vm533 = vcmp.ge.s32.totalorder %v531, 0
        %v534 = vsel %vm532, %v522, %v475
        %v535 = vsel %vm533, %v531, %v484
        %v536 = vsel %vm532, 1.0, %v456
        %v537 = vsel %vm533, 1.0, %v462
        %vm538 = vcmp.eq.s32.totalorder %v319, %v534
        %vm539 = vcmp.eq.s32.totalorder %v319, %v535
        %v540 = vsel %vm538, 1.0, 0.0
        %v541 = vsel %vm539, 1.0, 0.0
        %s542 = scalar_lea.vmem %s277, %s336
        %v543 = vld [vmem:[%s542] sm:$0xff]
        %v544 = vpack.c.bf16 %v543, %v543
        %v545 = vunpack.c.l.bf16 %v544
        %v546 = vsub.f32 %v543, %v545
        %v547 = vpack.c.bf16 %v546, %v546
        %v548 = vunpack.c.l.bf16 %v547
        %v549 = vsub.f32 %v546, %v548
        %vm550 = vcmask 64512
        %v552 = vsel %vm550, %v545, 0
        %v555 = vsel %vm550, %v548, 0
        %v558 = vsel %vm550, %v549, 0
        %560 = vmatprep.subr.mxu0 0.0
        %561 = vmatpush1.msra.mxu0 0.0
        %562 = vmatprep.subr.mxu0 0.0
        %563 = vmatpush1.msra.mxu0 0.0
        %564 = vmatprep.subr.mxu0 0.0
        %565 = vmatpush1.msra.mxu0 0.0
        %566 = vmatprep.subr.mxu0 0.0
        %567 = vmatpush1.msra.mxu0 0.0
        %568 = vmatprep.subr.mxu0 0.0
        %569 = vmatpush1.msra.mxu0 0.0
        %570 = vmatprep.subr.mxu0 0.0
        %571 = vmatpush1.msra.mxu0 0.0
        %572 = vmatprep.subr.mxu0 0.0
        %573 = vmatpush1.msra.mxu0 0.0
        %574 = vmatprep.subr.mxu0 0.0
        %575 = vmatpush1.msra.mxu0 0.0
        %576 = vmatprep.subr.mxu0 0.0
        %577 = vmatpush1.msra.mxu0 0.0
        %578 = vmatprep.subr.mxu0 0.0
        %579 = vmatpush1.msra.mxu0 0.0
        %580 = vmatprep.subr.mxu0 0.0
        %581 = vmatpush1.msra.mxu0 0.0
        %582 = vmatprep.subr.mxu0 0.0
        %583 = vmatpush1.msra.mxu0 0.0
        %584 = vmatprep.subr.mxu0 0.0
        %585 = vmatpush1.msra.mxu0 0.0
        %586 = vmatprep.subr.mxu0 0.0
        %587 = vmatpush1.msra.mxu0 0.0
        %588 = vmatprep.subr.mxu0 0.0
        %589 = vmatpush1.msra.mxu0 0.0
        %590 = vmatprep.subr.mxu0 %v541
        %591 = vmatpush1.msra.mxu0 %v540
        %592 = vmatprep.subr.mxu0 0.0
        %593 = vmatpush2.msra.mxu0 0.0
        %594 = vmatprep.subr.mxu0 0.0
        %595 = vmatpush2.msra.mxu0 0.0
        %596 = vmatprep.subr.mxu0 0.0
        %597 = vmatpush2.msra.mxu0 0.0
        %598 = vmatprep.subr.mxu0 0.0
        %599 = vmatpush2.msra.mxu0 0.0
        %600 = vmatprep.subr.mxu0 0.0
        %601 = vmatpush2.msra.mxu0 0.0
        %602 = vmatprep.subr.mxu0 0.0
        %603 = vmatpush2.msra.mxu0 0.0
        %604 = vmatprep.subr.mxu0 0.0
        %605 = vmatpush2.msra.mxu0 0.0
        %606 = vmatprep.subr.mxu0 0.0
        %607 = vmatpush2.msra.mxu0 0.0
        %608 = vmatprep.subr.mxu0 0.0
        %609 = vmatpush2.msra.mxu0 0.0
        %610 = vmatprep.subr.mxu0 0.0
        %611 = vmatpush2.msra.mxu0 0.0
        %612 = vmatprep.subr.mxu0 0.0
        %613 = vmatpush2.msra.mxu0 0.0
        %614 = vmatprep.subr.mxu0 0.0
        %615 = vmatpush2.msra.mxu0 0.0
        %616 = vmatprep.subr.mxu0 0.0
        %617 = vmatpush2.msra.mxu0 0.0
        %618 = vmatprep.subr.mxu0 0.0
        %619 = vmatpush2.msra.mxu0 0.0
        %620 = vmatprep.subr.mxu0 0.0
        %621 = vmatpush2.msra.mxu0 0.0
        %622 = vmatprep.subr.mxu0 0.0
        %623 = vmatpush2.msra.mxu0 0.0
        %624 = vmatprep.mubr.f32.mxu0 0.0
        %625 = vmatmul.mubr.f32.gmra.mxu0 %v552
        %v626 = vpop.f32.mrf.mxu0
        %v627 = vadd.f32 0.0, %v626
        %v628 = vpop.f32.mrf.mxu0
        %v629 = vadd.f32 0.0, %v628
        %630 = vmatprep.mubr.f32.mxu0 0.0
        %631 = vmatmul.mubr.f32.gmra.mxu0 %v555
        %v632 = vpop.f32.mrf.mxu0
        %v633 = vadd.f32 0.0, %v632
        %v634 = vpop.f32.mrf.mxu0
        %v635 = vadd.f32 0.0, %v634
        %636 = vmatprep.mubr.f32.mxu0 0.0
        %637 = vmatmul.mubr.f32.gmra.mxu0 %v558
        %v638 = vpop.f32.mrf.mxu0
        %v639 = vadd.f32 0.0, %v638
        %v640 = vpop.f32.mrf.mxu0
        %v641 = vadd.f32 0.0, %v640
        %642 = vdwg.mxu0
        %v643 = vadd.f32 %v627, %v633
        %v644 = vadd.f32 %v629, %v635
        %v645 = vadd.f32 %v643, %v639
        %v646 = vadd.f32 %v644, %v641
        %vm647 = vcmp.lt.f32.partialorder %v536, 0.5
        %vm648 = vcmp.lt.f32.partialorder %v537, 0.5
        %v649 = vsel %vm647, 0.0, %v645
        %v650 = vsel %vm648, 0.0, %v646
        %v651 = vadd.f32 %v649, 0.5
        %v652 = vadd.f32 %v650, 0.5
        %v653 = vcvt.f32.s32.to.zero.pseudo %v651
        %v654 = vcvt.f32.s32.to.zero.pseudo %v652
        %vm655 = vcmp.ne.s32.totalorder %v653, 0
        %vm656 = vcmp.ne.s32.totalorder %v654, 0
        %vm657 = vmand %vm655, %vm327
        %vm658 = vmand %vm656, %vm328
        %v661 = vrot.slane %v645, 2
        %v662 = vrot.slane %v646, 2
        %v665 = vadd.f32 %v645, %v661
        %v666 = vadd.f32 %v646, %v662
        %v667 = vmul.f32 %v665, 0.5
        %v668 = vmul.f32 %v666, 0.5
        %v669 = vrot.slane %v645, 6
        %v670 = vrot.slane %v646, 6
        %v673 = vsub.f32 %v645, %v669
        %v674 = vsub.f32 %v646, %v670
        %v675 = vmax.f32 %v673, 1e-08
        %v676 = vmax.f32 %v674, 1e-08
        %v678 = vlaneseq
        %v679 = vshrl.u32 %v678, 7
        %v680 = vsub.s32 0, %v679
        %v681 = vrot.slane %v305, %v680
        %v682 = vlaneseq
        %v683 = vshrl.u32 %v682, 7
        %v684 = vsub.s32 1, %v683
        %v685 = vrot.slane %v305, %v684
        %v688 = vsub.f32 %v667, %v681
        %v689 = vsub.f32 %v668, %v685
        %v691 = vlaneseq
        %v692 = vshrl.u32 %v691, 7
        %v693 = vsub.s32 0, %v692
        %v694 = vrot.slane %v309, %v693
        %v695 = vlaneseq
        %v696 = vshrl.u32 %v695, 7
        %v697 = vsub.s32 1, %v696
        %v698 = vrot.slane %v309, %v697
        %v701 = vmul.f32 %v688, %v694
        %v702 = vmul.f32 %v689, %v698
        %v704 = vlaneseq
        %v705 = vshrl.u32 %v704, 7
        %v706 = vsub.s32 0, %v705
        %v707 = vrot.slane %v307, %v706
        %v708 = vlaneseq
        %v709 = vshrl.u32 %v708, 7
        %v710 = vsub.s32 1, %v709
        %v711 = vrot.slane %v307, %v710
        %v714 = vsub.f32 %v667, %v707
        %v715 = vsub.f32 %v668, %v711
        %v717 = vlaneseq
        %v718 = vshrl.u32 %v717, 7
        %v719 = vsub.s32 0, %v718
        %v720 = vrot.slane %v311, %v719
        %v721 = vlaneseq
        %v722 = vshrl.u32 %v721, 7
        %v723 = vsub.s32 1, %v722
        %v724 = vrot.slane %v311, %v723
        %v727 = vmul.f32 %v714, %v720
        %v728 = vmul.f32 %v715, %v724
        %v729 = vlog2.pop %v675
        %v730 = vmul.f32 %v729, 0.6931472
        %v731 = vlog2.pop %v676
        %v732 = vmul.f32 %v731, 0.6931472
        %v734 = vlaneseq
        %v735 = vshrl.u32 %v734, 7
        %v736 = vsub.s32 0, %v735
        %v737 = vrot.slane %v313, %v736
        %v738 = vlaneseq
        %v739 = vshrl.u32 %v738, 7
        %v740 = vsub.s32 1, %v739
        %v741 = vrot.slane %v313, %v740
        %v744 = vsub.f32 %v730, %v737
        %v745 = vsub.f32 %v732, %v741
        %v746 = vmul.f32 %v744, 5.0
        %v747 = vmul.f32 %v745, 5.0
        %v749 = vlaneseq
        %v750 = vshrl.u32 %v749, 7
        %v751 = vsub.s32 0, %v750
        %v752 = vrot.slane %v315, %v751
        %v753 = vlaneseq
        %v754 = vshrl.u32 %v753, 7
        %v755 = vsub.s32 1, %v754
        %v756 = vrot.slane %v315, %v755
        %v759 = vsub.f32 %v730, %v752
        %v760 = vsub.f32 %v732, %v756
        %v761 = vmul.f32 %v759, 5.0
        %v762 = vmul.f32 %v760, 5.0
        %s763 = smul.u32 %s330, 2
        %s764 = smul.addr %s763, 4
        %s765 = scalar_lea.vmem %s284, %s764
        %v766 = vld [vmem:[%s765] sm:$0xff]
        %v769 = vcombine.low %v701, %v702
        %v771 = vsub.f32 %v766, %v769
        %v772 = vand.u32 2147483647, %v771
        %vm773 = vcmp.lt.f32.partialorder %v772, 1.0
        %v774 = vmul.f32 %v771, 0.5
        %v775 = vmul.f32 %v774, %v771
        %v776 = vsub.f32 %v772, 0.5
        %v777 = vsel %vm773, %v775, %v776
        %v780 = vcombine.low %v727, %v728
        %v782 = vsub.f32 %v766, %v780
        %v783 = vand.u32 2147483647, %v782
        %vm784 = vcmp.lt.f32.partialorder %v783, 1.0
        %v785 = vmul.f32 %v782, 0.5
        %v786 = vmul.f32 %v785, %v782
        %v787 = vsub.f32 %v783, 0.5
        %v788 = vsel %vm784, %v786, %v787
        %v790 = vrot.slane %v788, 5
        %v791 = vrot.slane %v790, 4
        %v793 = vadd.f32 %v777, %v791
        %v796 = vcombine.low %v746, %v747
        %v798 = vsub.f32 %v766, %v796
        %v799 = vand.u32 2147483647, %v798
        %vm800 = vcmp.lt.f32.partialorder %v799, 1.0
        %v801 = vmul.f32 %v798, 0.5
        %v802 = vmul.f32 %v801, %v798
        %v803 = vsub.f32 %v799, 0.5
        %v804 = vsel %vm800, %v802, %v803
        %v806 = vrot.slane %v804, 6
        %v807 = vrot.slane %v806, 4
        %v809 = vadd.f32 %v793, %v807
        %v812 = vcombine.low %v761, %v762
        %v814 = vsub.f32 %v766, %v812
        %v815 = vand.u32 2147483647, %v814
        %vm816 = vcmp.lt.f32.partialorder %v815, 1.0
        %v817 = vmul.f32 %v814, 0.5
        %v818 = vmul.f32 %v817, %v814
        %v819 = vsub.f32 %v815, 0.5
        %v820 = vsel %vm816, %v818, %v819
        %v822 = vrot.slane %v820, 7
        %v823 = vrot.slane %v822, 4
        %v825 = vadd.f32 %v809, %v823
        %s826 = smul.u32 %s330, 10
        %s827 = smul.addr %s826, 8
        %s828 = scalar_lea.vmem %s291, %s827
        %v829 = vld [vmem:[%s828] sm:$0xff]
        %v830 = vld [vmem:[%s828 + $0x8] sm:$0xff]
        %v831 = vld [vmem:[%s828 + $0x10] sm:$0xff]
        %v832 = vld [vmem:[%s828 + $0x18] sm:$0xff]
        %v833 = vld [vmem:[%s828 + $0x20] sm:$0xff]
        %v834 = vld [vmem:[%s828 + $0x28] sm:$0xff]
        %v835 = vld [vmem:[%s828 + $0x30] sm:$0xff]
        %v836 = vld [vmem:[%s828 + $0x38] sm:$0xff]
        %v837 = vld [vmem:[%s828 + $0x40] sm:$0xf]
        %v838 = vld [vmem:[%s828 + $0x48] sm:$0xf]
        %v839 = vmax.f32 %v829, %v833
        %v840 = vmax.f32 %v831, %v835
        %vm841 = vcmask 1043456
        %v842 = vsel %vm841, %v837, -inf
        %v843 = vmax.f32 %v839, %v842
        %v844 = vmax.f32 %v843, %v840
        %v845 = vrot.slane %v844, 4
        %v846 = vmax.f32 %v844, %v845
        %v847 = vrot.slane %v846, 2
        %v848 = vmax.f32 %v846, %v847
        %v849 = vrot.slane %v848, 1
        %v850 = vmax.f32 %v848, %v849
        %v851 = vmax.f32 %v830, %v834
        %v852 = vmax.f32 %v832, %v836
        %v853 = vsel %vm841, %v838, -inf
        %v854 = vmax.f32 %v851, %v853
        %v855 = vmax.f32 %v854, %v852
        %v856 = vrot.slane %v855, 4
        %v857 = vmax.f32 %v855, %v856
        %v858 = vrot.slane %v857, 2
        %v859 = vmax.f32 %v857, %v858
        %v860 = vrot.slane %v859, 1
        %v861 = vmax.f32 %v859, %v860
        %v862 = vsub.f32 %v829, %v850
        %v863 = vsub.f32 %v830, %v861
        %v864 = vsub.f32 %v831, %v850
        %v865 = vsub.f32 %v832, %v861
        %v866 = vsub.f32 %v833, %v850
        %v867 = vsub.f32 %v834, %v861
        %v868 = vsub.f32 %v835, %v850
        %v869 = vsub.f32 %v836, %v861
        %v870 = vsub.f32 %v837, %v850
        %v871 = vsub.f32 %v838, %v861
        %v872 = vmul.f32 %v862, 1.442695
        %v873 = vpow.pop %v872
        %v874 = vmul.f32 %v863, 1.442695
        %v875 = vpow.pop %v874
        %v876 = vmul.f32 %v864, 1.442695
        %v877 = vpow.pop %v876
        %v878 = vmul.f32 %v865, 1.442695
        %v879 = vpow.pop %v878
        %v880 = vmul.f32 %v866, 1.442695
        %v881 = vpow.pop %v880
        %v882 = vmul.f32 %v867, 1.442695
        %v883 = vpow.pop %v882
        %v884 = vmul.f32 %v868, 1.442695
        %v885 = vpow.pop %v884
        %v886 = vmul.f32 %v869, 1.442695
        %v887 = vpow.pop %v886
        %v888 = vmul.f32 %v870, 1.442695
        %v889 = vpow.pop %v888
        %v890 = vmul.f32 %v871, 1.442695
        %v891 = vpow.pop %v890
        %v892 = vadd.f32 %v873, %v877
        %v893 = vadd.f32 %v892, %v881
        %v894 = vadd.f32 %v893, %v885
        %v895 = vsel %vm841, %v889, 0.0
        %v896 = vadd.f32 %v894, %v895
        %v897 = vrot.slane %v896, 4
        %v898 = vadd.f32 %v896, %v897
        %v899 = vrot.slane %v898, 2
        %v900 = vadd.f32 %v898, %v899
        %v901 = vrot.slane %v900, 1
        %v902 = vadd.f32 %v900, %v901
        %v903 = vadd.f32 %v875, %v879
        %v904 = vadd.f32 %v903, %v883
        %v905 = vadd.f32 %v904, %v887
        %v906 = vsel %vm841, %v891, 0.0
        %v907 = vadd.f32 %v905, %v906
        %v908 = vrot.slane %v907, 4
        %v909 = vadd.f32 %v907, %v908
        %v910 = vrot.slane %v909, 2
        %v911 = vadd.f32 %v909, %v910
        %v912 = vrot.slane %v911, 1
        %v913 = vadd.f32 %v911, %v912
        %v914 = vlog2.pop %v902
        %v915 = vmul.f32 %v914, 0.6931472
        %v916 = vlog2.pop %v913
        %v917 = vmul.f32 %v916, 0.6931472
        %v918 = vadd.f32 %v915, %v850
        %v919 = vadd.f32 %v917, %v861
        %v920 = vlaneseq
        %v921 = vshrl.u32 %v920, 7
        %v922 = vsub.s32 4, %v921
        %v923 = vrot.slane %v653, %v922
        %v924 = vlaneseq
        %v925 = vshrl.u32 %v924, 7
        %v926 = vsub.s32 4, %v925
        %v927 = vrot.slane %v654, %v926
        %vm928 = vcmp.eq.s32.totalorder %v319, %v923
        %vm929 = vcmp.eq.s32.totalorder %v319, %v927
        %vm930 = vcmp.eq.s32.totalorder %v323, %v923
        %vm931 = vcmp.eq.s32.totalorder %v323, %v927
        %vm932 = vcmp.eq.s32.totalorder %v324, %v923
        %vm933 = vcmp.eq.s32.totalorder %v324, %v927
        %vm934 = vcmp.eq.s32.totalorder %v325, %v923
        %vm935 = vcmp.eq.s32.totalorder %v325, %v927
        %vm936 = vcmp.eq.s32.totalorder %v326, %v923
        %vm937 = vcmp.eq.s32.totalorder %v326, %v927
        %v938 = vsel %vm928, %v829, 0.0
        %v939 = vsel %vm929, %v830, 0.0
        %v940 = vsel %vm930, %v831, 0.0
        %v941 = vsel %vm931, %v832, 0.0
        %v942 = vsel %vm932, %v833, 0.0
        %v943 = vsel %vm933, %v834, 0.0
        %v944 = vsel %vm934, %v835, 0.0
        %v945 = vsel %vm935, %v836, 0.0
        %v946 = vsel %vm936, %v837, 0.0
        %v947 = vsel %vm937, %v838, 0.0
        %v948 = vadd.f32 %v938, %v940
        %v949 = vadd.f32 %v948, %v942
        %v950 = vadd.f32 %v949, %v944
        %v951 = vsel %vm841, %v946, 0.0
        %v952 = vadd.f32 %v950, %v951
        %v953 = vrot.slane %v952, 4
        %v954 = vadd.f32 %v952, %v953
        %v955 = vrot.slane %v954, 2
        %v956 = vadd.f32 %v954, %v955
        %v957 = vrot.slane %v956, 1
        %v958 = vadd.f32 %v956, %v957
        %v959 = vadd.f32 %v939, %v941
        %v960 = vadd.f32 %v959, %v943
        %v961 = vadd.f32 %v960, %v945
        %v962 = vsel %vm841, %v947, 0.0
        %v963 = vadd.f32 %v961, %v962
        %v964 = vrot.slane %v963, 4
        %v965 = vadd.f32 %v963, %v964
        %v966 = vrot.slane %v965, 2
        %v967 = vadd.f32 %v965, %v966
        %v968 = vrot.slane %v967, 1
        %v969 = vadd.f32 %v967, %v968
        %v970 = vsub.f32 %v918, %v958
        %v971 = vsub.f32 %v919, %v969
        %v972 = vsel %vm657, 1.0, 0.0
        %v973 = vsel %vm658, 1.0, 0.0
        %vm974 = vcmask 1044484
        %v975 = vsel %vm974, %v972, 0.0
        %v976 = vsel %vm974, %v973, 0.0
        %v977 = vadd.f32 %v975, %v976
        %978 = vadd.xlane.f32.xlu0 %v977
        %v979 = vpop.xlane.xlu0 %978
        %v981 = vlaneseq
        %v982 = vshrl.u32 %v981, 7
        %v983 = vsub.s32 0, %v982
        %v984 = vrot.slane %v825, %v983
        %v985 = vlaneseq
        %v986 = vshrl.u32 %v985, 7
        %v987 = vsub.s32 4, %v986
        %v988 = vrot.slane %v825, %v987
        %v991 = vsel %vm657, %v984, 0.0
        %v992 = vsel %vm658, %v988, 0.0
        %v993 = vsel %vm974, %v991, 0.0
        %v994 = vsel %vm974, %v992, 0.0
        %v995 = vadd.f32 %v993, %v994
        %996 = vadd.xlane.f32.xlu0 %v995
        %v997 = vpop.xlane.xlu0 %996
        %v998 = vsel %vm657, %v970, 0.0
        %v999 = vsel %vm658, %v971, 0.0
        %v1000 = vsel %vm974, %v998, 0.0
        %v1001 = vsel %vm974, %v999, 0.0
        %v1002 = vadd.f32 %v1000, %v1001
        %1003 = vadd.xlane.f32.xlu0 %v1002
        %v1004 = vpop.xlane.xlu0 %1003
        %vm1005 = vmxor %vm657, 1
        %vm1006 = vmxor %vm658, 1
        %vm1007 = vmand %vm1005, %vm327
        %vm1008 = vmand %vm1006, %vm328
        %v1009 = vsel %vm1007, %v970, 0.0
        %v1010 = vsel %vm1008, %v971, 0.0
        %v1011 = vmax.f32 %v1009, 0.0
        %v1012 = vmax.f32 %v1010, 0.0
        %v1013 = vmul.f32 %v979, 3.0
        %v1016 = vsel %vm974, %v1011, -inf
        %v1017 = vsel %vm974, %v1012, -inf
        %v1018 = vmax.f32 %v1016, %v1017
        %1019 = vmax.xlane.f32.xlu0 %v1018
        %v1020 = vpop.xlane.xlu0 %1019
        %v1022 = vadd.s32 %v1020, 1
        loop: start=0, step=1, limit=32
        $region48: #{multibox_loss.1} parent=44 // loop_pre_header
          _
        $region49: #{multibox_loss.1} parent=44 // loop_header
          %s1024 = sphi 0, %s1028
          %p1025 = scmp.ge.s32.totalorder %s1024, 32
          %v1029 = vphi 0, %v1044
          %v1030 = vphi %v1022, %v1045
        $region50: #{multibox_loss.1} parent=44 // loop_header_branch
          %1027 = sbr.rel (%p1025) target = $region54
        $region51: #{multibox_loss.1} parent=44 // loop_body
          %v1031 = vsub.s32 %v1030, %v1029
          %v1032 = vshrl.u32 %v1031, 1
          %v1033 = vadd.s32 %v1029, %v1032
          %vm1034 = vcmp.ge.s32.totalorder %v1011, %v1033
          %vm1035 = vcmp.ge.s32.totalorder %v1012, %v1033
          %v1036 = vsel %vm1034, 1.0, 0.0
          %v1037 = vsel %vm1035, 1.0, 0.0
          %v1038 = vsel %vm974, %v1036, 0.0
          %v1039 = vsel %vm974, %v1037, 0.0
          %v1040 = vadd.f32 %v1038, %v1039
          %1041 = vadd.xlane.f32.xlu0 %v1040
          %v1042 = vpop.xlane.xlu0 %1041
          %vm1043 = vcmp.ge.f32.partialorder %v1042, %v1013
          %v1044 = vsel %vm1043, %v1033, %v1029
          %v1045 = vsel %vm1043, %v1030, %v1033
        $region52: #{multibox_loss.1} parent=44 // loop_footer
          %s1028 = sadd.s32 1, %s1024
        $region53: #{multibox_loss.1} parent=44 // loop_footer_branch
          %1023 = sbr.rel target = $region49
        $region54: #{multibox_loss.1} parent=44 // loop_exit
          _
        %vm1047 = vcmp.gt.f32.partialorder %v1011, %v1029
        %vm1048 = vcmp.gt.f32.partialorder %v1012, %v1029
        %v1049 = vsel %vm1047, 1.0, 0.0
        %v1050 = vsel %vm1048, 1.0, 0.0
        %v1051 = vsel %vm974, %v1049, 0.0
        %v1052 = vsel %vm974, %v1050, 0.0
        %v1053 = vadd.f32 %v1051, %v1052
        %1054 = vadd.xlane.f32.xlu0 %v1053
        %v1055 = vpop.xlane.xlu0 %1054
        %v1056 = vsel %vm1047, %v1011, 0.0
        %v1057 = vsel %vm1048, %v1012, 0.0
        %v1058 = vsel %vm974, %v1056, 0.0
        %v1059 = vsel %vm974, %v1057, 0.0
        %v1060 = vadd.f32 %v1058, %v1059
        %1061 = vadd.xlane.f32.xlu0 %v1060
        %v1062 = vpop.xlane.xlu0 %1061
        %v1063 = vsub.f32 %v1013, %v1055
        %v1064 = vmax.f32 %v1063, 0.0
        %v1065 = vmul.f32 %v1064, %v1029
        %v1066 = vadd.f32 %v1062, %v1065
        %vm1067 = vcmp.gt.f32.partialorder %v1013, 0.5
        %v1068 = vsel %vm1067, %v1066, 0.0
        %vm1069 = vcmp.eq.s32.totalorder %v321, 0
        %v1070 = vsel %vm1069, %v979, 0.0
        %vm1071 = vcmp.eq.s32.totalorder %v321, 1
        %v1072 = vsel %vm1071, %v997, 0.0
        %v1073 = vadd.f32 %v1070, %v1072
        %vm1074 = vcmp.eq.s32.totalorder %v321, 2
        %v1075 = vsel %vm1074, %v1004, 0.0
        %v1076 = vadd.f32 %v1073, %v1075
        %vm1077 = vcmp.eq.s32.totalorder %v321, 3
        %v1078 = vsel %vm1077, %v1068, 0.0
        %v1079 = vadd.f32 %v1076, %v1078
        %v1080 = vadd.f32 %v335, %v1079
      $region45: #{multibox_loss.1} parent=39 // loop_footer
        %s334 = sadd.s32 1, %s330
      $region46: #{multibox_loss.1} parent=39 // loop_footer_branch
        %329 = sbr.rel target = $region42
      $region47: #{multibox_loss.1} parent=39 // loop_exit
        _
      %vm1081 = vcmp.eq.s32.totalorder %v319, 0
      %v1082 = vlaneseq
      %v1083 = vshrl.u32 %v1082, 7
      %v1084 = vsub.s32 4, %v1083
      %v1085 = vrot.slane %v335, %v1084
      %v1086 = vsel %vm1081, %v1085, 0.0
      %1087 = vst [vmem:[%s296] sm:$0xff] %v1086
      %p1088 = scmp.lt.s32.totalorder %s16, 1
      %s1089 = scalar_select %p1088, %s16, 1
      %s1090 = smul.addr %s1089, 8
      %s1091 = scalar_lea.vmem %s5, %s1090
      // Predicated region
      $region55: #{multibox_loss.1} parent=39 // pred_check
        %p1092 = pneg %p159
      $region56: #{multibox_loss.1} parent=39 // pred_check_branch
        %1094 = sbr.rel (%p1092) target = $region58
      $region57: #{multibox_loss.1} parent=39 // pred_region
        _
      $region58: #{multibox_loss.1} parent=39 // pred_fallthru
        _
    $region40: #{multibox_loss.1} parent=5 // pred_fallthru
      _
    %p1095 = scmp.le.s32.totalorder 2, %s11
    // Predicated region
    $region59: #{multibox_loss.1} parent=5 // pred_check
      %p1096 = pneg %p1095
    $region60: #{multibox_loss.1} parent=5 // pred_check_branch
      %1098 = sbr.rel (%p1096) target = $region62
    $region61: #{multibox_loss.1} parent=5 // pred_region
      %s1099 = ssub.s32 %s11, 2
      // Predicated region
      $region63: #{multibox_loss.1} parent=61 // pred_check
        %p1100 = pneg %p165
      $region64: #{multibox_loss.1} parent=61 // pred_check_branch
        %1102 = sbr.rel (%p1100) target = $region66
      $region65: #{multibox_loss.1} parent=61 // pred_region
        %p1103 = scmp.lt.s32.totalorder %s17, 1
        %s1104 = scalar_select %p1103, %s17, 1
        %s1105 = smul.addr %s1104, 8
        %s1106 = scalar_lea.vmem %s5, %s1105
      $region66: #{multibox_loss.1} parent=61 // pred_fallthru
        _
    $region62: #{multibox_loss.1} parent=5 // pred_fallthru
      _
  $region6: #{multibox_loss.1} parent=0 // loop_footer
    %s15 = sadd.s32 1, %s11
  $region7: #{multibox_loss.1} parent=0 // loop_footer_branch
    %10 = sbr.rel target = $region3
  $region8: #{multibox_loss.1} parent=0 // loop_exit
    _

</llo_original>
